<compile_context>
chip_gen: v6e
topology: v6e:2x2x1
jax: 0.10.0
libtpu: 0.0.40
codegen_flags: <defaults>
</compile_context>

<pallas_src>
import jax
import jax.numpy as jnp
from jax.experimental import pallas as pl
from jax.experimental.pallas import tpu as pltpu

_BN_EPS = 1e-3          # torch.nn.BatchNorm1d(eps=0.001) as used by scVI FCLayers
_ZINB_EPS = 1e-8
_LOG_2PI = 1.8378770664093453
_HEAD = 128             # each fused encoder head starts on a 128-lane boundary


# ----------------------------------------------------------------------------- helpers
def _round_up(n, m):
    return ((n + m - 1) // m) * m


def _softplus(x):
    # numerically stable softplus built only from ops Mosaic lowers (exp/log/abs/max)
    return jnp.maximum(x, 0.0) + jnp.log(1.0 + jnp.exp(-jnp.abs(x)))


def _lgamma_pos(z):
    # lgamma for strictly positive args: recurrence shift (+8) then Stirling series.
    # EUP optimization: the 8-log shift is folded into 2 logs of VALU products
    # (split into two products of 4 so the partial product cannot overflow f32), and the
    # series divides are replaced by one approx reciprocal (the series only feeds tiny
    # correction terms, so the ~1e-3 relative error of the fast path is negligible).
    p1 = z * (z + 1.0) * (z + 2.0) * (z + 3.0)
    p2 = (z + 4.0) * (z + 5.0) * (z + 6.0) * (z + 7.0)
    zp = z + 8.0
    inv = pl.reciprocal(zp, approx=True)
    inv2 = inv * inv
    series = inv * (8.333333333333333e-2
                    - inv2 * (2.777777777777778e-3 - inv2 * 7.936507936507937e-4))
    stirling = (zp - 0.5) * jnp.log(zp) - zp + 0.5 * _LOG_2PI + series
    return stirling - jnp.log(p1) - jnp.log(p2)


def _default_vmem_limit():
    # Explicit VMEM budget per generation (v5e/v6e: 128 MiB physical, 16/32 MiB default
    # scoped; v7x: 64 MiB physical).  Fallback if the query is unavailable.
    try:
        cap = pltpu.get_tpu_info().vmem_capacity_bytes
        return min(int(0.9 * cap), 112 * 1024 * 1024)
    except Exception:
        return 48 * 1024 * 1024


def _choose_gene_tile(n_genes_padded, bytes_per_gene, budget, requested=None):
    """Largest tile (from a 128-multiple candidate list) whose double-buffered streams fit."""
    if requested is not None:
        if n_genes_padded % requested:
            raise ValueError("gene_tile must divide the padded gene count")
        return int(requested)
    for t in (8192, 4096, 2048, 1024, 512, 256, 128):
        if n_genes_padded % t == 0 and 2 * t * bytes_per_gene <= budget:
            return t
    return 128


# ----------------------------------------------------------------------------- kernel 1
def _encoder_kernel(x_ref, eps_z_ref, eps_l_ref, w1_ref, b1_ref, g1_ref, be1_ref,
                    wh_ref, bh_ref, lm_ref, lv_ref,
                    z_ref, lib_ref, klz_ref, kll_ref,
                    h_acc):
    g = pl.program_id(0)
    ng = pl.num_programs(0)

    @pl.when(g == 0)
    def _():
        h_acc[...] = jnp.zeros_like(h_acc)

    # log_variational=True fused into the kernel: torch.log(1 + x); padded genes are 0.
    x_log = jnp.log(1.0 + x_ref[...])
    # accumulate the shared first layer of BOTH encoders: log1p(x) @ [w1_z | w1_l]
    # (bf16 weights / activations, f32 accumulation on the MXU).
    h_acc[...] += jnp.dot(x_log.astype(jnp.bfloat16), w1_ref[...],
                          preferred_element_type=jnp.float32)

    @pl.when(g == ng - 1)
    def _():
        h = h_acc[...] + b1_ref[...]
        # BatchNorm1d with per-call batch statistics (train-mode), biased var, eps=1e-3.
        mu = jnp.mean(h, axis=0, keepdims=True)
        var = jnp.mean((h - mu) * (h - mu), axis=0, keepdims=True)
        h = (h - mu) * jax.lax.rsqrt(var + _BN_EPS) * g1_ref[...] + be1_ref[...]
        h = jnp.maximum(h, 0.0)
        # TODO(synk): nn.Dropout(0.1) is stochastic in train mode; identity (eval) here.

        # fused heads, 128-lane-aligned layout:
        #   cols [0:128)   qz_mean   [128:256) qz_logvar   [256:384) ql_mean   [384:512) ql_logvar
        heads = (jnp.dot(h.astype(jnp.bfloat16), wh_ref[...],
                         preferred_element_type=jnp.float32) + bh_ref[...])
        L = z_ref.shape[1]
        qz_m = heads[:, 0:L]
        s_z = heads[:, _HEAD:_HEAD + L]
        qz_v = jnp.exp(s_z)
        # reparameterization: z = m + exp(0.5*s)*eps  (== m + sqrt(qv) * eps)
        z_ref[...] = qz_m + jnp.exp(0.5 * s_z) * eps_z_ref[...]
        ql_m = heads[:, 2 * _HEAD:2 * _HEAD + 1]
        s_l = heads[:, 3 * _HEAD:3 * _HEAD + 1]
        ql_v = jnp.exp(s_l)
        lib_ref[...] = ql_m + jnp.exp(0.5 * s_l) * eps_l_ref[...]

        # KL terms computed here (the gene-streaming kernel no longer needs qz_m/qz_v/...):
        # log(qz_v) == s_z exactly, so no extra log.
        klz_ref[...] = jnp.sum(0.5 * (qz_v + qz_m * qz_m - 1.0 - s_z),
                               axis=-1, keepdims=True)
        lm = lm_ref[...]
        lv = lv_ref[...]
        var_ratio = ql_v / lv
        t1 = (ql_m - lm) * (ql_m - lm) / lv
        kll_ref[...] = 0.5 * (var_ratio + t1 - 1.0 - jnp.log(var_ratio))


def encoder_forward(x_pad, eps_z, eps_l, local_l_mean, local_l_var, enc,
                    gene_tile=None, vmem_limit=None):
    B, Gp = x_pad.shape
    L = eps_z.shape[1]
    H2 = enc["w1"].shape[1]            # 2 * n_hidden (fused z-encoder + l-encoder)
    NHp = enc["wh"].shape[1]           # 4 * 128 padded head width
    if vmem_limit is None:
        vmem_limit = _default_vmem_limit()

    bytes_per_gene = B * 4 + H2 * 2    # x (f32) + w1 (bf16) per gene column
    resident = B * H2 * 4 + H2 * NHp * 2 + 16 * B * 4
    budget = max(int(0.7 * vmem_limit) - resident, 2 * 128 * bytes_per_gene)
    tg = _choose_gene_tile(Gp, bytes_per_gene, budget, gene_tile)
    ng = Gp // tg

    def const(shape):
        return pl.BlockSpec(shape, lambda g: (0, 0))

    in_specs = [
        pl.BlockSpec((B, tg), lambda g: (0, g)),      # x (gene-tiled)
        const((B, L)),                                # eps_z
        const((B, 1)),                                # eps_l
        pl.BlockSpec((tg, H2), lambda g: (g, 0)),     # w1 (gene-tiled contraction, bf16)
        const((1, H2)),                               # b1
        const((1, H2)),                               # BN gamma
        const((1, H2)),                               # BN beta
        const((H2, NHp)),                             # fused heads weight (bf16)
        const((1, NHp)),                              # fused heads bias
        const((B, 1)),                                # local_l_mean
        const((B, 1)),                                # local_l_var
    ]
    out_shape = (
        jax.ShapeDtypeStruct((B, L), jnp.float32),    # z
        jax.ShapeDtypeStruct((B, 1), jnp.float32),    # library
        jax.ShapeDtypeStruct((B, 1), jnp.float32),    # kl_z
        jax.ShapeDtypeStruct((B, 1), jnp.float32),    # kl_l
    )
    out_specs = tuple(const(s.shape) for s in out_shape)

    return pl.pallas_call(
        _encoder_kernel,
        out_shape=out_shape,
        grid_spec=pltpu.PrefetchScalarGridSpec(
            num_scalar_prefetch=0,
            grid=(ng,),
            in_specs=in_specs,
            out_specs=out_specs,
            scratch_shapes=[pltpu.VMEM((B, H2), jnp.float32)],   # first-layer accumulator
        ),
        compiler_params=pltpu.CompilerParams(
            dimension_semantics=("arbitrary",),       # contraction axis: sequential
            vmem_limit_bytes=vmem_limit),
    )(x_pad, eps_z, eps_l, enc["w1"], enc["b1"], enc["g1"], enc["be1"],
      enc["wh"], enc["bh"], local_l_mean, local_l_var)


# ----------------------------------------------------------------------------- kernel 2
def _decoder_loss_kernel(z_ref, lib_ref, wd_ref, bd_ref, gd_ref, bed_ref,
                         ws_ref, bs_ref, wp_ref, bp_ref,
                         theta_ref, logth_ref, lgth_ref, x_ref,
                         out_ref,
                         h_sc, logit_sc, m_sc, s_sc, acc_sc):
    phase = pl.program_id(0)      # 0: scale logits + softmax stats, 1: ZINB log-likelihood
    g = pl.program_id(1)
    ng = pl.num_programs(1)

    # -- once per call: decoder hidden layer, kept resident (bf16) in VMEM across tiles --
    @pl.when(jnp.logical_and(phase == 0, g == 0))
    def _():
        hd = (jnp.dot(z_ref[...].astype(jnp.bfloat16), wd_ref[...],
                      preferred_element_type=jnp.float32) + bd_ref[...])
        mu = jnp.mean(hd, axis=0, keepdims=True)
        var = jnp.mean((hd - mu) * (hd - mu), axis=0, keepdims=True)
        hd = (hd - mu) * jax.lax.rsqrt(var + _BN_EPS) * gd_ref[...] + bed_ref[...]
        h_sc[...] = jnp.maximum(hd, 0.0).astype(jnp.bfloat16)
        m_sc[...] = jnp.full(m_sc.shape, -jnp.inf, jnp.float32)
        s_sc[...] = jnp.zeros_like(s_sc)
        acc_sc[...] = jnp.zeros_like(acc_sc)

    # -------- pass 0: scale-head logits (computed once, cached) + online max/sum --------
    @pl.when(phase == 0)
    def _():
        logits = (jnp.dot(h_sc[...], ws_ref[...], preferred_element_type=jnp.float32)
                  + bs_ref[...])
        logit_sc[g] = logits                       # cache: no re-stream of ws in pass 1
        tile_max = jnp.max(logits, axis=-1, keepdims=True)
        new_m = jnp.maximum(m_sc[...], tile_max)
        s_sc[...] = (s_sc[...] * jnp.exp(m_sc[...] - new_m)
                     + jnp.sum(jnp.exp(logits - new_m), axis=-1, keepdims=True))
        m_sc[...] = new_m

    # -------- pass 1: ZINB log-likelihood, accumulated over gene tiles -----------------
    @pl.when(phase == 1)
    def _():
        eps = _ZINB_EPS
        logits = logit_sc[g]
        # exact softmax over all genes (keep the exact divide for the (B,1) denominator)
        px_scale = jnp.exp(logits - m_sc[...]) * (1.0 / s_sc[...])
        mu = jnp.exp(lib_ref[...]) * px_scale                     # px_rate
        pi = (jnp.dot(h_sc[...], wp_ref[...], preferred_element_type=jnp.float32)
              + bp_ref[...])                                      # px_dropout logits
        theta = theta_ref[...]                                    # (1, tg): dispersion='gene'
        x = x_ref[...]

        softplus_pi = _softplus(-pi)
        log_theta_mu_eps = jnp.log(theta + mu + eps)
        pi_theta_log = -pi + theta * (logth_ref[...] - log_theta_mu_eps)
        case_zero = _softplus(pi_theta_log) - softplus_pi
        mul_case_zero = jnp.where(x < eps, 1.0, 0.0) * case_zero
        case_non_zero = (-softplus_pi + pi_theta_log
                         + x * (jnp.log(mu + eps) - log_theta_mu_eps)
                         + _lgamma_pos(x + theta)
                         - lgth_ref[...]                           # lgamma(theta) precomputed
                         - _lgamma_pos(x + 1.0))
        mul_case_non_zero = jnp.where(x > eps, 1.0, 0.0) * case_non_zero
        acc_sc[...] += jnp.sum(mul_case_zero + mul_case_non_zero, axis=-1, keepdims=True)
        # TODO(synk): if bundle dumps show vreg spills for very wide tiles, sub-chunk this
        #             loss body over 512-lane slices (pl.ds + pl.multiple_of) keeping the
        #             matmul tile wide.

    @pl.when(jnp.logical_and(phase == 1, g == ng - 1))
    def _():
        out_ref[...] = -acc_sc[...]               # reconst_loss (negative ZINB log-lik)


def decoder_loss_forward(x_pad, z, library, dec, theta, log_theta_eps, lgamma_theta,
                         gene_tile=None, vmem_limit=None):
    B, Gp = x_pad.shape
    L = z.shape[1]
    H = dec["wd"].shape[1]
    if vmem_limit is None:
        vmem_limit = _default_vmem_limit()

    # x(f32) + ws(bf16) + wp(bf16) + 5 per-gene (1, .) f32 rows, per gene column
    bytes_per_gene = B * 4 + 2 * H * 2 + 5 * 4
    resident = B * Gp * 4 + B * H * 2 + L * H * 2 + 16 * B * 4   # logit scratch dominates
    budget = max(int(0.7 * vmem_limit) - resident, 2 * 128 * bytes_per_gene)
    tg = _choose_gene_tile(Gp, bytes_per_gene, budget, gene_tile)
    ng = Gp // tg

    def const(shape):
        return pl.BlockSpec(shape, lambda p, g: (0, 0))

    def pass0(rows):     # streamed during the softmax-stats pass only
        return pl.BlockSpec((rows, tg), lambda p, g: (0, (1 - p) * g))

    def pass1(rows):     # streamed during the ZINB pass only
        return pl.BlockSpec((rows, tg), lambda p, g: (0, p * g))

    in_specs = [
        const((B, L)),            # z
        const((B, 1)),            # library
        const((L, H)),            # wd (bf16)
        const((1, H)),            # bd
        const((1, H)),            # BN gamma
        const((1, H)),            # BN beta
        pass0(H),                 # ws (scale head, bf16)
        pass0(1),                 # bs
        pass1(H),                 # wp (dropout head, bf16)
        pass1(1),                 # bp
        pass1(1),                 # theta = exp(px_r)
        pass1(1),                 # log(theta + eps)
        pass1(1),                 # lgamma(theta)
        pass1(B),                 # x (raw counts)
    ]
    out_shape = jax.ShapeDtypeStruct((B, 1), jnp.float32)
    out_specs = const((B, 1))

    return pl.pallas_call(
        _decoder_loss_kernel,
        out_shape=out_shape,
        grid_spec=pltpu.PrefetchScalarGridSpec(
            num_scalar_prefetch=0,
            grid=(2, ng),                               # (pass, gene tile)
            in_specs=in_specs,
            out_specs=out_specs,
            scratch_shapes=[
                pltpu.VMEM((B, H), jnp.bfloat16),       # decoder hidden h (resident)
                pltpu.VMEM((ng, B, tg), jnp.float32),   # cached scale logits (whole gene axis)
                pltpu.VMEM((B, 1), jnp.float32),        # running max of scale logits
                pltpu.VMEM((B, 1), jnp.float32),        # running sum of exp(logit - max)
                pltpu.VMEM((B, 1), jnp.float32),        # ZINB log-lik accumulator
            ],
        ),
        compiler_params=pltpu.CompilerParams(
            dimension_semantics=("arbitrary", "arbitrary"),   # scratch carries across both
            vmem_limit_bytes=vmem_limit),
    )(z, library, dec["wd"], dec["bd"], dec["gd"], dec["bed"],
      dec["ws"], dec["bs"], dec["wp"], dec["bp"],
      theta, log_theta_eps, lgamma_theta, x_pad)


# ----------------------------------------------------------------------------- params
def init_vae_params(key, n_input, n_hidden, n_latent):
    assert n_latent <= _HEAD, "fused-head layout assumes n_latent <= 128"
    Gp = _round_up(n_input, 128)                 # padded gene axis (multiple of 128)
    ks = jax.random.split(key, 10)

    def lin(k, fan_in, fan_out):
        kw, kb = jax.random.split(k)
        lim = 1.0 / jnp.sqrt(float(fan_in))
        w = jax.random.uniform(kw, (fan_in, fan_out), jnp.float32, -lim, lim)
        b = jax.random.uniform(kb, (1, fan_out), jnp.float32, -lim, lim)
        return w, b

    # z-encoder and l-encoder raw layers
    w1z, b1z = lin(ks[0], n_input, n_hidden)
    wmz, bmz = lin(ks[1], n_hidden, n_latent)
    wvz, bvz = lin(ks[2], n_hidden, n_latent)
    w1l, b1l = lin(ks[3], n_input, n_hidden)
    wml, bml = lin(ks[4], n_hidden, 1)
    wvl, bvl = lin(ks[5], n_hidden, 1)

    # fused + gene-padded first layer [w1_z | w1_l]: padded rows are zero (and log1p(0)=0)
    w1 = jnp.zeros((Gp, 2 * n_hidden), jnp.float32)
    w1 = w1.at[:n_input, :n_hidden].set(w1z).at[:n_input, n_hidden:].set(w1l)
    b1 = jnp.concatenate([b1z, b1l], axis=1)
    g1 = jnp.ones((1, 2 * n_hidden), jnp.float32)
    be1 = jnp.zeros((1, 2 * n_hidden), jnp.float32)

    # fused heads on 128-lane boundaries: [qz_mean | qz_logvar | ql_mean | ql_logvar]
    wh = jnp.zeros((2 * n_hidden, 4 * _HEAD), jnp.float32)
    wh = wh.at[:n_hidden, 0:n_latent].set(wmz)
    wh = wh.at[:n_hidden, _HEAD:_HEAD + n_latent].set(wvz)
    wh = wh.at[n_hidden:, 2 * _HEAD:2 * _HEAD + 1].set(wml)
    wh = wh.at[n_hidden:, 3 * _HEAD:3 * _HEAD + 1].set(wvl)
    bh = jnp.zeros((1, 4 * _HEAD), jnp.float32)
    bh = bh.at[:, 0:n_latent].set(bmz)
    bh = bh.at[:, _HEAD:_HEAD + n_latent].set(bvz)
    bh = bh.at[:, 2 * _HEAD:2 * _HEAD + 1].set(bml)
    bh = bh.at[:, 3 * _HEAD:3 * _HEAD + 1].set(bvl)

    enc = dict(w1=w1.astype(jnp.bfloat16), b1=b1, g1=g1, be1=be1,
               wh=wh.astype(jnp.bfloat16), bh=bh)

    wd, bd = lin(ks[6], n_latent, n_hidden)
    ws, bs = lin(ks[7], n_hidden, n_input)
    wp, bp = lin(ks[8], n_hidden, n_input)
    # gene padding: zero scale/dropout weights, scale bias -1e9 (-> softmax weight exactly 0),
    # dropout bias 0, px_r 0 (theta = 1).  Padded genes then contribute exactly 0 to the loss.
    ws_p = jnp.zeros((n_hidden, Gp), jnp.float32).at[:, :n_input].set(ws)
    bs_p = jnp.full((1, Gp), -1e9, jnp.float32).at[:, :n_input].set(bs)
    wp_p = jnp.zeros((n_hidden, Gp), jnp.float32).at[:, :n_input].set(wp)
    bp_p = jnp.zeros((1, Gp), jnp.float32).at[:, :n_input].set(bp)
    dec = dict(wd=wd.astype(jnp.bfloat16), bd=bd,
               gd=jnp.ones((1, n_hidden), jnp.float32),
               bed=jnp.zeros((1, n_hidden), jnp.float32),
               ws=ws_p.astype(jnp.bfloat16), bs=bs_p,
               wp=wp_p.astype(jnp.bfloat16), bp=bp_p)

    # px_r parameter (dispersion='gene'); scaled init keeps theta = exp(px_r) well-behaved
    px_r = jnp.zeros((1, Gp), jnp.float32).at[:, :n_input].set(
        0.1 * jax.random.normal(ks[9], (1, n_input), jnp.float32))

    meta = dict(n_input=n_input, n_genes_padded=Gp, n_latent=n_latent)
    return dict(enc=enc, dec=dec, px_r=px_r, meta=meta)


def vae_forward(params, x, local_l_mean, local_l_var, key, gene_tile=None):
    """Returns (reconst_loss + kl_divergence_l, kl_divergence_z), each of shape (B,)."""
    meta = params["meta"]
    G, Gp, L = meta["n_input"], meta["n_genes_padded"], meta["n_latent"]
    B = x.shape[0]
    if Gp != G:
        x = jnp.pad(x, ((0, 0), (0, Gp - G)))         # padded genes contribute exactly 0
    k_z, k_l = jax.random.split(key)
    eps_z = jax.random.normal(k_z, (B, L), jnp.float32)
    eps_l = jax.random.normal(k_l, (B, 1), jnp.float32)

    z, library, kl_z, kl_l = encoder_forward(
        x, eps_z, eps_l, local_l_mean, local_l_var, params["enc"], gene_tile)

    # batch-independent per-gene constants precomputed once (tiny (1, Gp) XLA ops),
    # removing their transcendentals from the hot ZINB loop.
    theta = jnp.exp(params["px_r"])
    log_theta_eps = jnp.log(theta + _ZINB_EPS)
    lgamma_theta = jax.lax.lgamma(theta)

    neg_ll = decoder_loss_forward(x, z, library, params["dec"],
                                  theta, log_theta_eps, lgamma_theta, gene_tile)
    return (neg_ll + kl_l)[:, 0], kl_z[:, 0]


# ----------------------------------------------------------------------------- demo
if __name__ == "__main__":
    B, G, H, L = 8, 256, 128, 10          # batch, n_input genes, n_hidden, n_latent

    key = jax.random.PRNGKey(0)
    k_params, k_x, k_eps = jax.random.split(key, 3)

    params = init_vae_params(k_params, G, H, L)
    x = jax.random.poisson(k_x, 2.0, (B, G)).astype(jnp.float32)      # count data
    local_l_mean = jnp.full((B, 1), 5.0, jnp.float32)
    local_l_var = jnp.full((B, 1), 1.0, jnp.float32)

    # gene_tile=128 -> 2 gene tiles: exercises the cross-tile softmax, the cached-logit
    # scratch and the two-phase ZINB accumulation.
    loss_a, loss_b = vae_forward(params, x, local_l_mean, local_l_var, k_eps, gene_tile=128)
    loss_a = jax.block_until_ready(loss_a)
    loss_b = jax.block_until_ready(loss_b)

    assert loss_a.shape == (B,) and loss_b.shape == (B,)
    assert bool(jnp.all(jnp.isfinite(loss_a))) and bool(jnp.all(jnp.isfinite(loss_b)))
    print("KERNEL_OK")
</pallas_src>

<mosaic_0001>
module attributes {stable_mosaic.version = 11 : i64} {
  func.func @_encoder_kernel(%arg0: i32, %arg1: memref<8x128xf32, #tpu.memory_space<vmem>>, %arg2: memref<8x10xf32, #tpu.memory_space<vmem>>, %arg3: memref<8x1xf32, #tpu.memory_space<vmem>>, %arg4: memref<128x256xbf16, #tpu.memory_space<vmem>>, %arg5: memref<1x256xf32, #tpu.memory_space<vmem>>, %arg6: memref<1x256xf32, #tpu.memory_space<vmem>>, %arg7: memref<1x256xf32, #tpu.memory_space<vmem>>, %arg8: memref<256x512xbf16, #tpu.memory_space<vmem>>, %arg9: memref<1x512xf32, #tpu.memory_space<vmem>>, %arg10: memref<8x1xf32, #tpu.memory_space<vmem>>, %arg11: memref<8x1xf32, #tpu.memory_space<vmem>>, %arg12: memref<8x10xf32, #tpu.memory_space<vmem>>, %arg13: memref<8x1xf32, #tpu.memory_space<vmem>>, %arg14: memref<8x1xf32, #tpu.memory_space<vmem>>, %arg15: memref<8x1xf32, #tpu.memory_space<vmem>>, %arg16: memref<8x256xf32, #tpu.memory_space<vmem>>) attributes {dimension_semantics = [#tpu.dimension_semantics<arbitrary>], iteration_bounds = array<i64: 2>, scalar_prefetch = 0 : i64, scratch_operands = 1 : i64, tpu.core_type = #tpu.core_type<tc>, window_params = [{transform_indices = @transform_0, window_bounds = array<i64: 8, 128>}, {pipeline_mode = #tpu.pipeline_mode<synchronous>, transform_indices = @transform_1, window_bounds = array<i64: 8, 10>}, {pipeline_mode = #tpu.pipeline_mode<synchronous>, transform_indices = @transform_2, window_bounds = array<i64: 8, 1>}, {transform_indices = @transform_3, window_bounds = array<i64: 128, 256>}, {pipeline_mode = #tpu.pipeline_mode<synchronous>, transform_indices = @transform_4, window_bounds = array<i64: 1, 256>}, {pipeline_mode = #tpu.pipeline_mode<synchronous>, transform_indices = @transform_5, window_bounds = array<i64: 1, 256>}, {pipeline_mode = #tpu.pipeline_mode<synchronous>, transform_indices = @transform_6, window_bounds = array<i64: 1, 256>}, {pipeline_mode = #tpu.pipeline_mode<synchronous>, transform_indices = @transform_7, window_bounds = array<i64: 256, 512>}, {pipeline_mode = #tpu.pipeline_mode<synchronous>, transform_indices = @transform_8, window_bounds = array<i64: 1, 512>}, {pipeline_mode = #tpu.pipeline_mode<synchronous>, transform_indices = @transform_9, window_bounds = array<i64: 8, 1>}, {pipeline_mode = #tpu.pipeline_mode<synchronous>, transform_indices = @transform_10, window_bounds = array<i64: 8, 1>}, {pipeline_mode = #tpu.pipeline_mode<synchronous>, transform_indices = @transform_11, window_bounds = array<i64: 8, 10>}, {pipeline_mode = #tpu.pipeline_mode<synchronous>, transform_indices = @transform_12, window_bounds = array<i64: 8, 1>}, {pipeline_mode = #tpu.pipeline_mode<synchronous>, transform_indices = @transform_13, window_bounds = array<i64: 8, 1>}, {pipeline_mode = #tpu.pipeline_mode<synchronous>, transform_indices = @transform_14, window_bounds = array<i64: 8, 1>}]} {
    %c0_i32 = arith.constant 0 : i32
    %0 = arith.cmpi eq, %arg0, %c0_i32 : i32
    %1 = arith.extui %0 : i1 to i32
    %c0_i32_0 = arith.constant 0 : i32
    %2 = arith.cmpi ne, %1, %c0_i32_0 : i32
    scf.if %2 {
      %cst_10 = arith.constant 0.000000e+00 : f32
      %16 = vector.broadcast %cst_10 : f32 to vector<8x256xf32>
      %c0_11 = arith.constant 0 : index
      %c0_12 = arith.constant 0 : index
      %17 = vector.load %arg16[%c0_11, %c0_12] : memref<8x256xf32, #tpu.memory_space<vmem>>, vector<8x256xf32>
      tpu.vector_store %arg16[%c0_11, %c0_12], %16 {strides = array<i32>} : memref<8x256xf32, #tpu.memory_space<vmem>>, vector<8x256xf32>,
    } else {
    }
    %c0 = arith.constant 0 : index
    %c0_1 = arith.constant 0 : index
    %3 = vector.load %arg1[%c0, %c0_1] : memref<8x128xf32, #tpu.memory_space<vmem>>, vector<8x128xf32>
    %cst = arith.constant 1.000000e+00 : f32
    %4 = vector.broadcast %cst : f32 to vector<8x128xf32>
    %5 = arith.addf %4, %3 : vector<8x128xf32>
    %6 = math.log %5 : vector<8x128xf32>
    %c0_2 = arith.constant 0 : index
    %c0_3 = arith.constant 0 : index
    %7 = vector.load %arg16[%c0_2, %c0_3] : memref<8x256xf32, #tpu.memory_space<vmem>>, vector<8x256xf32>
    %8 = arith.truncf %6 : vector<8x128xf32> to vector<8x128xbf16>
    %c0_4 = arith.constant 0 : index
    %c0_5 = arith.constant 0 : index
    %9 = vector.load %arg4[%c0_4, %c0_5] : memref<128x256xbf16, #tpu.memory_space<vmem>>, vector<128x256xbf16>
    %cst_6 = arith.constant dense<0.000000e+00> : vector<8x256xf32>
    %10 = tpu.matmul %8, %9, %cst_6 {dimension_numbers = #tpu.dot_dimension_numbers<[1], [0], [0], [1], [0, 0, 1, 1], [], []>} : vector<8x128xbf16>, vector<128x256xbf16>, vector<8x256xf32> -> vector<8x256xf32>
    %11 = arith.addf %7, %10 : vector<8x256xf32>
    %c0_7 = arith.constant 0 : index
    %c0_8 = arith.constant 0 : index
    %12 = vector.load %arg16[%c0_7, %c0_8] : memref<8x256xf32, #tpu.memory_space<vmem>>, vector<8x256xf32>
    tpu.vector_store %arg16[%c0_7, %c0_8], %11 {strides = array<i32>} : memref<8x256xf32, #tpu.memory_space<vmem>>, vector<8x256xf32>,
    %c1_i32 = arith.constant 1 : i32
    %13 = arith.cmpi eq, %arg0, %c1_i32 : i32
    %14 = arith.extui %13 : i1 to i32
    %c0_i32_9 = arith.constant 0 : i32
    %15 = arith.cmpi ne, %14, %c0_i32_9 : i32
    scf.if %15 {
      %c0_10 = arith.constant 0 : index
      %c0_11 = arith.constant 0 : index
      %16 = vector.load %arg16[%c0_10, %c0_11] : memref<8x256xf32, #tpu.memory_space<vmem>>, vector<8x256xf32>
      %c0_12 = arith.constant 0 : index
      %c0_13 = arith.constant 0 : index
      %17 = vector.load %arg5[%c0_12, %c0_13] : memref<1x256xf32, #tpu.memory_space<vmem>>, vector<1x256xf32>
      %18 = vector.broadcast %17 : vector<1x256xf32> to vector<8x256xf32>
      %19 = arith.addf %16, %18 : vector<8x256xf32>
      %cst_14 = arith.constant dense<0.000000e+00> : vector<256xf32>
      %20 = vector.multi_reduction <add>, %19, %cst_14 [0] : vector<8x256xf32> to vector<256xf32>
      %21 = vector.shape_cast %20 : vector<256xf32> to vector<1x256xf32>
      %cst_15 = arith.constant 8.000000e+00 : f32
      %22 = vector.broadcast %cst_15 : f32 to vector<1x256xf32>
      %23 = arith.divf %21, %22 : vector<1x256xf32>
      %24 = vector.broadcast %23 : vector<1x256xf32> to vector<8x256xf32>
      %25 = arith.subf %19, %24 : vector<8x256xf32>
      %26 = vector.broadcast %23 : vector<1x256xf32> to vector<8x256xf32>
      %27 = arith.subf %19, %26 : vector<8x256xf32>
      %28 = arith.mulf %25, %27 : vector<8x256xf32>
      %cst_16 = arith.constant dense<0.000000e+00> : vector<256xf32>
      %29 = vector.multi_reduction <add>, %28, %cst_16 [0] : vector<8x256xf32> to vector<256xf32>
      %30 = vector.shape_cast %29 : vector<256xf32> to vector<1x256xf32>
      %cst_17 = arith.constant 8.000000e+00 : f32
      %31 = vector.broadcast %cst_17 : f32 to vector<1x256xf32>
      %32 = arith.divf %30, %31 : vector<1x256xf32>
      %33 = vector.broadcast %23 : vector<1x256xf32> to vector<8x256xf32>
      %34 = arith.subf %19, %33 : vector<8x256xf32>
      %cst_18 = arith.constant 1.000000e-03 : f32
      %35 = vector.broadcast %cst_18 : f32 to vector<1x256xf32>
      %36 = arith.addf %32, %35 : vector<1x256xf32>
      %37 = math.rsqrt %36 : vector<1x256xf32>
      %38 = vector.broadcast %37 : vector<1x256xf32> to vector<8x256xf32>
      %39 = arith.mulf %34, %38 : vector<8x256xf32>
      %c0_19 = arith.constant 0 : index
      %c0_20 = arith.constant 0 : index
      %40 = vector.load %arg6[%c0_19, %c0_20] : memref<1x256xf32, #tpu.memory_space<vmem>>, vector<1x256xf32>
      %41 = vector.broadcast %40 : vector<1x256xf32> to vector<8x256xf32>
      %42 = arith.mulf %39, %41 : vector<8x256xf32>
      %c0_21 = arith.constant 0 : index
      %c0_22 = arith.constant 0 : index
      %43 = vector.load %arg7[%c0_21, %c0_22] : memref<1x256xf32, #tpu.memory_space<vmem>>, vector<1x256xf32>
      %44 = vector.broadcast %43 : vector<1x256xf32> to vector<8x256xf32>
      %45 = arith.addf %42, %44 : vector<8x256xf32>
      %cst_23 = arith.constant 0.000000e+00 : f32
      %46 = vector.broadcast %cst_23 : f32 to vector<8x256xf32>
      %47 = arith.maximumf %45, %46 : vector<8x256xf32>
      %48 = arith.truncf %47 : vector<8x256xf32> to vector<8x256xbf16>
      %c0_24 = arith.constant 0 : index
      %c0_25 = arith.constant 0 : index
      %49 = vector.load %arg8[%c0_24, %c0_25] : memref<256x512xbf16, #tpu.memory_space<vmem>>, vector<256x512xbf16>
      %cst_26 = arith.constant dense<0.000000e+00> : vector<8x512xf32>
      %50 = tpu.matmul %48, %49, %cst_26 {dimension_numbers = #tpu.dot_dimension_numbers<[1], [0], [0], [1], [0, 0, 1, 1], [], []>} : vector<8x256xbf16>, vector<256x512xbf16>, vector<8x512xf32> -> vector<8x512xf32>
      %c0_27 = arith.constant 0 : index
      %c0_28 = arith.constant 0 : index
      %51 = vector.load %arg9[%c0_27, %c0_28] : memref<1x512xf32, #tpu.memory_space<vmem>>, vector<1x512xf32>
      %52 = vector.broadcast %51 : vector<1x512xf32> to vector<8x512xf32>
      %53 = arith.addf %50, %52 : vector<8x512xf32>
      %54 = vector.extract_strided_slice %53 {offsets = [0, 0], sizes = [8, 10], strides = [1, 1]} : vector<8x512xf32> to vector<8x10xf32>
      %55 = vector.extract_strided_slice %53 {offsets = [0, 128], sizes = [8, 10], strides = [1, 1]} : vector<8x512xf32> to vector<8x10xf32>
      %56 = math.exp %55 : vector<8x10xf32>
      %cst_29 = arith.constant 5.000000e-01 : f32
      %57 = vector.broadcast %cst_29 : f32 to vector<8x10xf32>
      %58 = arith.mulf %57, %55 : vector<8x10xf32>
      %59 = math.exp %58 : vector<8x10xf32>
      %c0_30 = arith.constant 0 : index
      %c0_31 = arith.constant 0 : index
      %60 = vector.load %arg2[%c0_30, %c0_31] : memref<8x10xf32, #tpu.memory_space<vmem>>, vector<8x10xf32>
      %61 = arith.mulf %59, %60 : vector<8x10xf32>
      %62 = arith.addf %54, %61 : vector<8x10xf32>
      %c0_32 = arith.constant 0 : index
      %c0_33 = arith.constant 0 : index
      %63 = vector.load %arg12[%c0_32, %c0_33] : memref<8x10xf32, #tpu.memory_space<vmem>>, vector<8x10xf32>
      tpu.vector_store %arg12[%c0_32, %c0_33], %62 {strides = array<i32>} : memref<8x10xf32, #tpu.memory_space<vmem>>, vector<8x10xf32>,
      %64 = vector.extract_strided_slice %53 {offsets = [0, 256], sizes = [8, 1], strides = [1, 1]} : vector<8x512xf32> to vector<8x1xf32>
      %65 = vector.extract_strided_slice %53 {offsets = [0, 384], sizes = [8, 1], strides = [1, 1]} : vector<8x512xf32> to vector<8x1xf32>
      %66 = math.exp %65 : vector<8x1xf32>
      %cst_34 = arith.constant 5.000000e-01 : f32
      %67 = vector.broadcast %cst_34 : f32 to vector<8x1xf32>
      %68 = arith.mulf %67, %65 : vector<8x1xf32>
      %69 = math.exp %68 : vector<8x1xf32>
      %c0_35 = arith.constant 0 : index
      %c0_36 = arith.constant 0 : index
      %70 = vector.load %arg3[%c0_35, %c0_36] : memref<8x1xf32, #tpu.memory_space<vmem>>, vector<8x1xf32>
      %71 = arith.mulf %69, %70 : vector<8x1xf32>
      %72 = arith.addf %64, %71 : vector<8x1xf32>
      %c0_37 = arith.constant 0 : index
      %c0_38 = arith.constant 0 : index
      %73 = vector.load %arg13[%c0_37, %c0_38] : memref<8x1xf32, #tpu.memory_space<vmem>>, vector<8x1xf32>
      tpu.vector_store %arg13[%c0_37, %c0_38], %72 {strides = array<i32>} : memref<8x1xf32, #tpu.memory_space<vmem>>, vector<8x1xf32>,
      %74 = arith.mulf %54, %54 : vector<8x10xf32>
      %75 = arith.addf %56, %74 : vector<8x10xf32>
      %cst_39 = arith.constant 1.000000e+00 : f32
      %76 = vector.broadcast %cst_39 : f32 to vector<8x10xf32>
      %77 = arith.subf %75, %76 : vector<8x10xf32>
      %78 = arith.subf %77, %55 : vector<8x10xf32>
      %cst_40 = arith.constant 5.000000e-01 : f32
      %79 = vector.broadcast %cst_40 : f32 to vector<8x10xf32>
      %80 = arith.mulf %79, %78 : vector<8x10xf32>
      %cst_41 = arith.constant dense<0.000000e+00> : vector<8xf32>
      %81 = vector.multi_reduction <add>, %80, %cst_41 [1] : vector<8x10xf32> to vector<8xf32>
      %82 = vector.shape_cast %81 : vector<8xf32> to vector<8x1xf32>
      %c0_42 = arith.constant 0 : index
      %c0_43 = arith.constant 0 : index
      %83 = vector.load %arg14[%c0_42, %c0_43] : memref<8x1xf32, #tpu.memory_space<vmem>>, vector<8x1xf32>
      tpu.vector_store %arg14[%c0_42, %c0_43], %82 {strides = array<i32>} : memref<8x1xf32, #tpu.memory_space<vmem>>, vector<8x1xf32>,
      %c0_44 = arith.constant 0 : index
      %c0_45 = arith.constant 0 : index
      %84 = vector.load %arg10[%c0_44, %c0_45] : memref<8x1xf32, #tpu.memory_space<vmem>>, vector<8x1xf32>
      %c0_46 = arith.constant 0 : index
      %c0_47 = arith.constant 0 : index
      %85 = vector.load %arg11[%c0_46, %c0_47] : memref<8x1xf32, #tpu.memory_space<vmem>>, vector<8x1xf32>
      %86 = arith.divf %66, %85 : vector<8x1xf32>
      %87 = arith.subf %64, %84 : vector<8x1xf32>
      %88 = arith.subf %64, %84 : vector<8x1xf32>
      %89 = arith.mulf %87, %88 : vector<8x1xf32>
      %90 = arith.divf %89, %85 : vector<8x1xf32>
      %91 = arith.addf %86, %90 : vector<8x1xf32>
      %cst_48 = arith.constant 1.000000e+00 : f32
      %92 = vector.broadcast %cst_48 : f32 to vector<8x1xf32>
      %93 = arith.subf %91, %92 : vector<8x1xf32>
      %94 = math.log %86 : vector<8x1xf32>
      %95 = arith.subf %93, %94 : vector<8x1xf32>
      %cst_49 = arith.constant 5.000000e-01 : f32
      %96 = vector.broadcast %cst_49 : f32 to vector<8x1xf32>
      %97 = arith.mulf %96, %95 : vector<8x1xf32>
      %c0_50 = arith.constant 0 : index
      %c0_51 = arith.constant 0 : index
      %98 = vector.load %arg15[%c0_50, %c0_51] : memref<8x1xf32, #tpu.memory_space<vmem>>, vector<8x1xf32>
      tpu.vector_store %arg15[%c0_50, %c0_51], %97 {strides = array<i32>} : memref<8x1xf32, #tpu.memory_space<vmem>>, vector<8x1xf32>,
    } else {
    }
    return
  }
  func.func @transform_0(%arg0: i32) -> (i32, i32) {
    %c0_i32 = arith.constant 0 : i32
    %c0_i32_0 = arith.constant 0 : i32
    return %c0_i32, %arg0 : i32, i32
  }
  func.func @transform_1(%arg0: i32) -> (i32, i32) {
    %c0_i32 = arith.constant 0 : i32
    %c0_i32_0 = arith.constant 0 : i32
    %c0_i32_1 = arith.constant 0 : i32
    return %c0_i32, %c0_i32_0 : i32, i32
  }
  func.func @transform_2(%arg0: i32) -> (i32, i32) {
    %c0_i32 = arith.constant 0 : i32
    %c0_i32_0 = arith.constant 0 : i32
    %c0_i32_1 = arith.constant 0 : i32
    return %c0_i32, %c0_i32_0 : i32, i32
  }
  func.func @transform_3(%arg0: i32) -> (i32, i32) {
    %c0_i32 = arith.constant 0 : i32
    %c0_i32_0 = arith.constant 0 : i32
    return %arg0, %c0_i32 : i32, i32
  }
  func.func @transform_4(%arg0: i32) -> (i32, i32) {
    %c0_i32 = arith.constant 0 : i32
    %c0_i32_0 = arith.constant 0 : i32
    %c0_i32_1 = arith.constant 0 : i32
    return %c0_i32, %c0_i32_0 : i32, i32
  }
  func.func @transform_5(%arg0: i32) -> (i32, i32) {
    %c0_i32 = arith.constant 0 : i32
    %c0_i32_0 = arith.constant 0 : i32
    %c0_i32_1 = arith.constant 0 : i32
    return %c0_i32, %c0_i32_0 : i32, i32
  }
  func.func @transform_6(%arg0: i32) -> (i32, i32) {
    %c0_i32 = arith.constant 0 : i32
    %c0_i32_0 = arith.constant 0 : i32
    %c0_i32_1 = arith.constant 0 : i32
    return %c0_i32, %c0_i32_0 : i32, i32
  }
  func.func @transform_7(%arg0: i32) -> (i32, i32) {
    %c0_i32 = arith.constant 0 : i32
    %c0_i32_0 = arith.constant 0 : i32
    %c0_i32_1 = arith.constant 0 : i32
    return %c0_i32, %c0_i32_0 : i32, i32
  }
  func.func @transform_8(%arg0: i32) -> (i32, i32) {
    %c0_i32 = arith.constant 0 : i32
    %c0_i32_0 = arith.constant 0 : i32
    %c0_i32_1 = arith.constant 0 : i32
    return %c0_i32, %c0_i32_0 : i32, i32
  }
  func.func @transform_9(%arg0: i32) -> (i32, i32) {
    %c0_i32 = arith.constant 0 : i32
    %c0_i32_0 = arith.constant 0 : i32
    %c0_i32_1 = arith.constant 0 : i32
    return %c0_i32, %c0_i32_0 : i32, i32
  }
  func.func @transform_10(%arg0: i32) -> (i32, i32) {
    %c0_i32 = arith.constant 0 : i32
    %c0_i32_0 = arith.constant 0 : i32
    %c0_i32_1 = arith.constant 0 : i32
    return %c0_i32, %c0_i32_0 : i32, i32
  }
  func.func @transform_11(%arg0: i32) -> (i32, i32) {
    %c0_i32 = arith.constant 0 : i32
    %c0_i32_0 = arith.constant 0 : i32
    %c0_i32_1 = arith.constant 0 : i32
    return %c0_i32, %c0_i32_0 : i32, i32
  }
  func.func @transform_12(%arg0: i32) -> (i32, i32) {
    %c0_i32 = arith.constant 0 : i32
    %c0_i32_0 = arith.constant 0 : i32
    %c0_i32_1 = arith.constant 0 : i32
    return %c0_i32, %c0_i32_0 : i32, i32
  }
  func.func @transform_13(%arg0: i32) -> (i32, i32) {
    %c0_i32 = arith.constant 0 : i32
    %c0_i32_0 = arith.constant 0 : i32
    %c0_i32_1 = arith.constant 0 : i32
    return %c0_i32, %c0_i32_0 : i32, i32
  }
  func.func @transform_14(%arg0: i32) -> (i32, i32) {
    %c0_i32 = arith.constant 0 : i32
    %c0_i32_0 = arith.constant 0 : i32
    %c0_i32_1 = arith.constant 0 : i32
    return %c0_i32, %c0_i32_0 : i32, i32
  }
}

</mosaic_0001>

<llo_original>
// kernel: tpu_custom_call.1
$region0: #{tpu_custom_call.1}
  #allocation0 [shape = 'u32[]', space=smem, size = 0x4, offset = 0x4, fixed_abs, tag = 'smem constant byte address 0x4 - core index']
  #allocation1 [shape = 'u32[144,128]{1,0:T(1,128)}', space=vmem, size = 0x12000, scoped, tag = 'internal scratch']
  #allocation2 [shape = 'f32[8,256]{1,0:T(8,128)}', space=vmem, size = 0x2000, scoped, tag = 'scratch operand']
  %s0 = inlined_call_operand.vmem [shape: f32[8,256], index: 0, kind: input, shape index: {}]
  %s1 = inlined_call_operand.vmem [shape: f32[8,10], index: 1, kind: input, shape index: {}]
  %s2 = inlined_call_operand.vmem [shape: f32[8,1], index: 2, kind: input, shape index: {}]
  %s3 = inlined_call_operand.hbm [shape: bf16[256,256], index: 3, kind: input, shape index: {}]
  %s4 = inlined_call_operand.vmem [shape: f32[1,256], index: 4, kind: input, shape index: {}]
  %s5 = inlined_call_operand.vmem [shape: f32[1,256], index: 5, kind: input, shape index: {}]
  %s6 = inlined_call_operand.vmem [shape: f32[1,256], index: 6, kind: input, shape index: {}]
  %s7 = inlined_call_operand.hbm [shape: bf16[256,512], index: 7, kind: input, shape index: {}]
  %s8 = inlined_call_operand.vmem [shape: f32[1,512], index: 8, kind: input, shape index: {}]
  %s9 = inlined_call_operand.vmem [shape: f32[8,1], index: 9, kind: input, shape index: {}]
  %s10 = inlined_call_operand.vmem [shape: f32[8,1], index: 10, kind: input, shape index: {}]
  %s11 = inlined_call_operand.hbm [shape: f32[8,10], index: 11, kind: output, shape index: {0}]
  %s12 = inlined_call_operand.vmem [shape: f32[8,1], index: 12, kind: output, shape index: {1}]
  %s13 = inlined_call_operand.vmem [shape: f32[8,1], index: 13, kind: output, shape index: {2}]
  %s14 = inlined_call_operand.vmem [shape: f32[8,1], index: 14, kind: output, shape index: {3}]
  %15 = xla_tuple %s11, %s12, %s13, %s14
  %s16 = sld [smem:[#allocation0]]
  $region117: #{tpu_custom_call.1} parent=0
    _
  %s18 = ssub.s32 1, %s16
  %s19 = scalar_select 0, %s18, %s16
  $region1: #{tpu_custom_call.1} parent=0
    #allocation3 [shape = 'u8[131072]{0}', space=vmem, size = 0x20000, scoped, tag = 'input window, operand 3']
    #allocation4 [shape = 's32[2]{0}', space=sflag, size = 0x8, scoped, tag = 'scoped memory for tpu_custom_call.1']
    #allocation5 [shape = 's32[2]{0}', space=sflag, size = 0x8, scoped, tag = 'scoped memory for tpu_custom_call.1']
    #allocation6 [shape = 'u8[262144]{0}', space=vmem, size = 0x40000, scoped, tag = 'input window, operand 7, single buffered']
    #allocation7 [shape = 's32[1]{0}', space=sflag, size = 0x4, scoped, tag = 'scoped memory for tpu_custom_call.1']
    #allocation8 [shape = 'u8[4096]{0}', space=vmem, size = 0x1000, scoped, tag = 'output window, operand 0, single buffered']
    %20 = vsyncpa [#allocation4], 0
    %s21 = scalar_lea.sflag [#allocation4], 1
    %22 = vsyncpa %s21, 0
    %23 = vsyncpa [#allocation7], 0
    %24 = vsyncpa [#allocation5], 0
    loop: start=0, step=1, limit=4
    $region2: #{tpu_custom_call.1} parent=1 // loop_pre_header
      _
    $region3: #{tpu_custom_call.1} parent=1 // loop_header
      %s26 = sphi 0, %s30
      %p27 = scmp.ge.s32.totalorder %s26, 4
      %s36 = sphi 0, %s38
      %s39 = sphi 0, %s36
      %s40 = sphi 0, %s39
      %s56 = sphi 0, %s40
      %s60 = sphi 0, %s60
      %s62 = sphi 0, %s60
      %s63 = sphi 0, %s62
      %s77 = sphi 0, %s63
      %s81 = sphi 0, %s81
      %s83 = sphi 0, %s81
      %s84 = sphi 0, %s83
      %s98 = sphi 0, %s84
      %s104 = sphi 0, %s106
      %s107 = sphi 0, %s104
      %s108 = sphi 0, %s107
      %s124 = sphi 0, %s108
      %s128 = sphi 0, %s128
      %s130 = sphi 0, %s128
      %s131 = sphi 0, %s130
      %s145 = sphi 0, %s131
      %s149 = sphi 0, %s149
      %s151 = sphi 0, %s149
      %s152 = sphi 0, %s151
      %s166 = sphi 0, %s152
      %s170 = sphi 0, %s170
      %s172 = sphi 0, %s170
      %s173 = sphi 0, %s172
      %s187 = sphi 0, %s173
      %s191 = sphi 0, %s191
      %s193 = sphi 0, %s191
      %s194 = sphi 0, %s193
      %s208 = sphi 0, %s194
      %s212 = sphi 0, %s212
      %s214 = sphi 0, %s212
      %s215 = sphi 0, %s214
      %s229 = sphi 0, %s215
      %s233 = sphi 0, %s233
      %s235 = sphi 0, %s233
      %s236 = sphi 0, %s235
      %s250 = sphi 0, %s236
      %s254 = sphi 0, %s254
      %s256 = sphi 0, %s254
      %s257 = sphi 0, %s256
      %s271 = sphi 0, %s257
      %s275 = sphi 0, %s275
      %s277 = sphi 0, %s275
      %s278 = sphi 0, %s277
      %s292 = sphi 0, %s278
      %s296 = sphi 0, %s296
      %s298 = sphi 0, %s296
      %s299 = sphi 0, %s298
      %s313 = sphi 0, %s299
      %s317 = sphi 0, %s317
      %s319 = sphi 0, %s317
      %s320 = sphi 0, %s319
      %s334 = sphi 0, %s320
      %s338 = sphi 0, %s338
      %s340 = sphi 0, %s338
      %s341 = sphi 0, %s340
      %s355 = sphi 0, %s341
    $region4: #{tpu_custom_call.1} parent=1 // loop_header_branch
      %29 = sbr.rel (%p27) target = $region8
    $region5: #{tpu_custom_call.1} parent=1 // loop_body
      %s31 = ssub.s32 %s26, 1
      %s32 = ssub.s32 %s26, 2
      %s33 = sadd.s32 %s26, 1
      %s34 = ssub.s32 %s26, %s33
      %p35 = scmp.eq.s32.totalorder %s34, 0
      %s37 = sadd.s32 %s36, 1
      %s38 = scalar_select %p35, %s36, %s37
      %p41 = pneg %p35
      %p42 = scmp.eq.s32.totalorder %s26, 1
      %p43 = por %p41, %p42
      %p44 = scmp.ne.s32.totalorder %s36, %s39
      %p45 = scmp.eq.s32.totalorder %s26, 0
      %p46 = por %p44, %p45
      %p47 = scmp.ne.s32.totalorder %s36, %s39
      %p48 = scmp.eq.s32.totalorder %s31, 1
      %p49 = por %p47, %p48
      %p50 = scmp.ne.s32.totalorder %s39, %s40
      %p51 = scmp.eq.s32.totalorder %s31, 0
      %p52 = por %p50, %p51
      %p53 = scmp.ne.s32.totalorder %s39, %s40
      %p54 = scmp.eq.s32.totalorder %s32, 1
      %p55 = por %p53, %p54
      %p57 = scmp.ne.s32.totalorder %s40, %s56
      %p58 = scmp.eq.s32.totalorder %s32, 0
      %p59 = por %p57, %p58
      %s61 = sadd.s32 %s60, 1
      %p64 = scmp.eq.s32.totalorder %s26, 1
      %p65 = scmp.ne.s32.totalorder %s60, %s62
      %p66 = scmp.eq.s32.totalorder %s26, 0
      %p67 = por %p65, %p66
      %p68 = scmp.ne.s32.totalorder %s60, %s62
      %p69 = scmp.eq.s32.totalorder %s31, 1
      %p70 = por %p68, %p69
      %p71 = scmp.ne.s32.totalorder %s62, %s63
      %p72 = scmp.eq.s32.totalorder %s31, 0
      %p73 = por %p71, %p72
      %p74 = scmp.ne.s32.totalorder %s62, %s63
      %p75 = scmp.eq.s32.totalorder %s32, 1
      %p76 = por %p74, %p75
      %p78 = scmp.ne.s32.totalorder %s63, %s77
      %p79 = scmp.eq.s32.totalorder %s32, 0
      %p80 = por %p78, %p79
      %s82 = sadd.s32 %s81, 1
      %p85 = scmp.eq.s32.totalorder %s26, 1
      %p86 = scmp.ne.s32.totalorder %s81, %s83
      %p87 = scmp.eq.s32.totalorder %s26, 0
      %p88 = por %p86, %p87
      %p89 = scmp.ne.s32.totalorder %s81, %s83
      %p90 = scmp.eq.s32.totalorder %s31, 1
      %p91 = por %p89, %p90
      %p92 = scmp.ne.s32.totalorder %s83, %s84
      %p93 = scmp.eq.s32.totalorder %s31, 0
      %p94 = por %p92, %p93
      %p95 = scmp.ne.s32.totalorder %s83, %s84
      %p96 = scmp.eq.s32.totalorder %s32, 1
      %p97 = por %p95, %p96
      %p99 = scmp.ne.s32.totalorder %s84, %s98
      %p100 = scmp.eq.s32.totalorder %s32, 0
      %p101 = por %p99, %p100
      %s102 = ssub.s32 %s26, %s33
      %p103 = scmp.eq.s32.totalorder %s102, 0
      %s105 = sadd.s32 %s104, 1
      %s106 = scalar_select %p103, %s104, %s105
      %p109 = pneg %p103
      %p110 = scmp.eq.s32.totalorder %s26, 1
      %p111 = por %p109, %p110
      %p112 = scmp.ne.s32.totalorder %s104, %s107
      %p113 = scmp.eq.s32.totalorder %s26, 0
      %p114 = por %p112, %p113
      %p115 = scmp.ne.s32.totalorder %s104, %s107
      %p116 = scmp.eq.s32.totalorder %s31, 1
      %p117 = por %p115, %p116
      %p118 = scmp.ne.s32.totalorder %s107, %s108
      %p119 = scmp.eq.s32.totalorder %s31, 0
      %p120 = por %p118, %p119
      %p121 = scmp.ne.s32.totalorder %s107, %s108
      %p122 = scmp.eq.s32.totalorder %s32, 1
      %p123 = por %p121, %p122
      %p125 = scmp.ne.s32.totalorder %s108, %s124
      %p126 = scmp.eq.s32.totalorder %s32, 0
      %p127 = por %p125, %p126
      %s129 = sadd.s32 %s128, 1
      %p132 = scmp.eq.s32.totalorder %s26, 1
      %p133 = scmp.ne.s32.totalorder %s128, %s130
      %p134 = scmp.eq.s32.totalorder %s26, 0
      %p135 = por %p133, %p134
      %p136 = scmp.ne.s32.totalorder %s128, %s130
      %p137 = scmp.eq.s32.totalorder %s31, 1
      %p138 = por %p136, %p137
      %p139 = scmp.ne.s32.totalorder %s130, %s131
      %p140 = scmp.eq.s32.totalorder %s31, 0
      %p141 = por %p139, %p140
      %p142 = scmp.ne.s32.totalorder %s130, %s131
      %p143 = scmp.eq.s32.totalorder %s32, 1
      %p144 = por %p142, %p143
      %p146 = scmp.ne.s32.totalorder %s131, %s145
      %p147 = scmp.eq.s32.totalorder %s32, 0
      %p148 = por %p146, %p147
      %s150 = sadd.s32 %s149, 1
      %p153 = scmp.eq.s32.totalorder %s26, 1
      %p154 = scmp.ne.s32.totalorder %s149, %s151
      %p155 = scmp.eq.s32.totalorder %s26, 0
      %p156 = por %p154, %p155
      %p157 = scmp.ne.s32.totalorder %s149, %s151
      %p158 = scmp.eq.s32.totalorder %s31, 1
      %p159 = por %p157, %p158
      %p160 = scmp.ne.s32.totalorder %s151, %s152
      %p161 = scmp.eq.s32.totalorder %s31, 0
      %p162 = por %p160, %p161
      %p163 = scmp.ne.s32.totalorder %s151, %s152
      %p164 = scmp.eq.s32.totalorder %s32, 1
      %p165 = por %p163, %p164
      %p167 = scmp.ne.s32.totalorder %s152, %s166
      %p168 = scmp.eq.s32.totalorder %s32, 0
      %p169 = por %p167, %p168
      %s171 = sadd.s32 %s170, 1
      %p174 = scmp.eq.s32.totalorder %s26, 1
      %p175 = scmp.ne.s32.totalorder %s170, %s172
      %p176 = scmp.eq.s32.totalorder %s26, 0
      %p177 = por %p175, %p176
      %p178 = scmp.ne.s32.totalorder %s170, %s172
      %p179 = scmp.eq.s32.totalorder %s31, 1
      %p180 = por %p178, %p179
      %p181 = scmp.ne.s32.totalorder %s172, %s173
      %p182 = scmp.eq.s32.totalorder %s31, 0
      %p183 = por %p181, %p182
      %p184 = scmp.ne.s32.totalorder %s172, %s173
      %p185 = scmp.eq.s32.totalorder %s32, 1
      %p186 = por %p184, %p185
      %p188 = scmp.ne.s32.totalorder %s173, %s187
      %p189 = scmp.eq.s32.totalorder %s32, 0
      %p190 = por %p188, %p189
      %s192 = sadd.s32 %s191, 1
      %p195 = scmp.eq.s32.totalorder %s26, 1
      %p196 = scmp.ne.s32.totalorder %s191, %s193
      %p197 = scmp.eq.s32.totalorder %s26, 0
      %p198 = por %p196, %p197
      %p199 = scmp.ne.s32.totalorder %s191, %s193
      %p200 = scmp.eq.s32.totalorder %s31, 1
      %p201 = por %p199, %p200
      %p202 = scmp.ne.s32.totalorder %s193, %s194
      %p203 = scmp.eq.s32.totalorder %s31, 0
      %p204 = por %p202, %p203
      %p205 = scmp.ne.s32.totalorder %s193, %s194
      %p206 = scmp.eq.s32.totalorder %s32, 1
      %p207 = por %p205, %p206
      %p209 = scmp.ne.s32.totalorder %s194, %s208
      %p210 = scmp.eq.s32.totalorder %s32, 0
      %p211 = por %p209, %p210
      %s213 = sadd.s32 %s212, 1
      %p216 = scmp.eq.s32.totalorder %s26, 1
      %p217 = scmp.ne.s32.totalorder %s212, %s214
      %p218 = scmp.eq.s32.totalorder %s26, 0
      %p219 = por %p217, %p218
      %p220 = scmp.ne.s32.totalorder %s212, %s214
      %p221 = scmp.eq.s32.totalorder %s31, 1
      %p222 = por %p220, %p221
      %p223 = scmp.ne.s32.totalorder %s214, %s215
      %p224 = scmp.eq.s32.totalorder %s31, 0
      %p225 = por %p223, %p224
      %p226 = scmp.ne.s32.totalorder %s214, %s215
      %p227 = scmp.eq.s32.totalorder %s32, 1
      %p228 = por %p226, %p227
      %p230 = scmp.ne.s32.totalorder %s215, %s229
      %p231 = scmp.eq.s32.totalorder %s32, 0
      %p232 = por %p230, %p231
      %s234 = sadd.s32 %s233, 1
      %p237 = scmp.eq.s32.totalorder %s26, 1
      %p238 = scmp.ne.s32.totalorder %s233, %s235
      %p239 = scmp.eq.s32.totalorder %s26, 0
      %p240 = por %p238, %p239
      %p241 = scmp.ne.s32.totalorder %s233, %s235
      %p242 = scmp.eq.s32.totalorder %s31, 1
      %p243 = por %p241, %p242
      %p244 = scmp.ne.s32.totalorder %s235, %s236
      %p245 = scmp.eq.s32.totalorder %s31, 0
      %p246 = por %p244, %p245
      %p247 = scmp.ne.s32.totalorder %s235, %s236
      %p248 = scmp.eq.s32.totalorder %s32, 1
      %p249 = por %p247, %p248
      %p251 = scmp.ne.s32.totalorder %s236, %s250
      %p252 = scmp.eq.s32.totalorder %s32, 0
      %p253 = por %p251, %p252
      %s255 = sadd.s32 %s254, 1
      %p258 = scmp.eq.s32.totalorder %s26, 1
      %p259 = scmp.ne.s32.totalorder %s254, %s256
      %p260 = scmp.eq.s32.totalorder %s26, 0
      %p261 = por %p259, %p260
      %p262 = scmp.ne.s32.totalorder %s254, %s256
      %p263 = scmp.eq.s32.totalorder %s31, 1
      %p264 = por %p262, %p263
      %p265 = scmp.ne.s32.totalorder %s256, %s257
      %p266 = scmp.eq.s32.totalorder %s31, 0
      %p267 = por %p265, %p266
      %p268 = scmp.ne.s32.totalorder %s256, %s257
      %p269 = scmp.eq.s32.totalorder %s32, 1
      %p270 = por %p268, %p269
      %p272 = scmp.ne.s32.totalorder %s257, %s271
      %p273 = scmp.eq.s32.totalorder %s32, 0
      %p274 = por %p272, %p273
      %s276 = sadd.s32 %s275, 1
      %p279 = scmp.eq.s32.totalorder %s26, 1
      %p280 = scmp.ne.s32.totalorder %s275, %s277
      %p281 = scmp.eq.s32.totalorder %s26, 0
      %p282 = por %p280, %p281
      %p283 = scmp.ne.s32.totalorder %s275, %s277
      %p284 = scmp.eq.s32.totalorder %s31, 1
      %p285 = por %p283, %p284
      %p286 = scmp.ne.s32.totalorder %s277, %s278
      %p287 = scmp.eq.s32.totalorder %s31, 0
      %p288 = por %p286, %p287
      %p289 = scmp.ne.s32.totalorder %s277, %s278
      %p290 = scmp.eq.s32.totalorder %s32, 1
      %p291 = por %p289, %p290
      %p293 = scmp.ne.s32.totalorder %s278, %s292
      %p294 = scmp.eq.s32.totalorder %s32, 0
      %p295 = por %p293, %p294
      %s297 = sadd.s32 %s296, 1
      %p300 = scmp.eq.s32.totalorder %s26, 1
      %p301 = scmp.ne.s32.totalorder %s296, %s298
      %p302 = scmp.eq.s32.totalorder %s26, 0
      %p303 = por %p301, %p302
      %p304 = scmp.ne.s32.totalorder %s296, %s298
      %p305 = scmp.eq.s32.totalorder %s31, 1
      %p306 = por %p304, %p305
      %p307 = scmp.ne.s32.totalorder %s298, %s299
      %p308 = scmp.eq.s32.totalorder %s31, 0
      %p309 = por %p307, %p308
      %p310 = scmp.ne.s32.totalorder %s298, %s299
      %p311 = scmp.eq.s32.totalorder %s32, 1
      %p312 = por %p310, %p311
      %p314 = scmp.ne.s32.totalorder %s299, %s313
      %p315 = scmp.eq.s32.totalorder %s32, 0
      %p316 = por %p314, %p315
      %s318 = sadd.s32 %s317, 1
      %p321 = scmp.eq.s32.totalorder %s26, 1
      %p322 = scmp.ne.s32.totalorder %s317, %s319
      %p323 = scmp.eq.s32.totalorder %s26, 0
      %p324 = por %p322, %p323
      %p325 = scmp.ne.s32.totalorder %s317, %s319
      %p326 = scmp.eq.s32.totalorder %s31, 1
      %p327 = por %p325, %p326
      %p328 = scmp.ne.s32.totalorder %s319, %s320
      %p329 = scmp.eq.s32.totalorder %s31, 0
      %p330 = por %p328, %p329
      %p331 = scmp.ne.s32.totalorder %s319, %s320
      %p332 = scmp.eq.s32.totalorder %s32, 1
      %p333 = por %p331, %p332
      %p335 = scmp.ne.s32.totalorder %s320, %s334
      %p336 = scmp.eq.s32.totalorder %s32, 0
      %p337 = por %p335, %p336
      %s339 = sadd.s32 %s338, 1
      %p342 = scmp.eq.s32.totalorder %s26, 1
      %p343 = scmp.ne.s32.totalorder %s338, %s340
      %p344 = scmp.eq.s32.totalorder %s26, 0
      %p345 = por %p343, %p344
      %p346 = scmp.ne.s32.totalorder %s338, %s340
      %p347 = scmp.eq.s32.totalorder %s31, 1
      %p348 = por %p346, %p347
      %p349 = scmp.ne.s32.totalorder %s340, %s341
      %p350 = scmp.eq.s32.totalorder %s31, 0
      %p351 = por %p349, %p350
      %p352 = scmp.ne.s32.totalorder %s340, %s341
      %p353 = scmp.eq.s32.totalorder %s32, 1
      %p354 = por %p352, %p353
      %p356 = scmp.ne.s32.totalorder %s341, %s355
      %p357 = scmp.eq.s32.totalorder %s32, 0
      %p358 = por %p356, %p357
      %p359 = scmp.le.s32.totalorder 1, %s26
      %p360 = scmp.lt.s32.totalorder %s26, 3
      %p361 = pnand %p359, %p360
      %p362 = pneg %p361
      // Predicated region
      $region9: #{tpu_custom_call.1} parent=5 // pred_check
        _
      $region10: #{tpu_custom_call.1} parent=5 // pred_check_branch
        %364 = sbr.rel (%p361) target = $region12
      $region11: #{tpu_custom_call.1} parent=5 // pred_region
        %s365 = ssub.s32 %s26, 1
        // Predicated region
        $region13: #{tpu_custom_call.1} parent=11 // pred_check
          %p366 = pneg %p73
        $region14: #{tpu_custom_call.1} parent=11 // pred_check_branch
          %368 = sbr.rel (%p366) target = $region16
        $region15: #{tpu_custom_call.1} parent=11 // pred_region
          _
        $region16: #{tpu_custom_call.1} parent=11 // pred_fallthru
          _
        // Predicated region
        $region17: #{tpu_custom_call.1} parent=11 // pred_check
          %p369 = pneg %p94
        $region18: #{tpu_custom_call.1} parent=11 // pred_check_branch
          %371 = sbr.rel (%p369) target = $region20
        $region19: #{tpu_custom_call.1} parent=11 // pred_region
          _
        $region20: #{tpu_custom_call.1} parent=11 // pred_fallthru
          _
        // Predicated region
        $region21: #{tpu_custom_call.1} parent=11 // pred_check
          %p372 = pneg %p141
        $region22: #{tpu_custom_call.1} parent=11 // pred_check_branch
          %374 = sbr.rel (%p372) target = $region24
        $region23: #{tpu_custom_call.1} parent=11 // pred_region
          _
        $region24: #{tpu_custom_call.1} parent=11 // pred_fallthru
          _
        // Predicated region
        $region25: #{tpu_custom_call.1} parent=11 // pred_check
          %p375 = pneg %p162
        $region26: #{tpu_custom_call.1} parent=11 // pred_check_branch
          %377 = sbr.rel (%p375) target = $region28
        $region27: #{tpu_custom_call.1} parent=11 // pred_region
          _
        $region28: #{tpu_custom_call.1} parent=11 // pred_fallthru
          _
        // Predicated region
        $region29: #{tpu_custom_call.1} parent=11 // pred_check
          %p378 = pneg %p183
        $region30: #{tpu_custom_call.1} parent=11 // pred_check_branch
          %380 = sbr.rel (%p378) target = $region32
        $region31: #{tpu_custom_call.1} parent=11 // pred_region
          _
        $region32: #{tpu_custom_call.1} parent=11 // pred_fallthru
          _
        // Predicated region
        $region33: #{tpu_custom_call.1} parent=11 // pred_check
          %p381 = pneg %p204
        $region34: #{tpu_custom_call.1} parent=11 // pred_check_branch
          %383 = sbr.rel (%p381) target = $region36
        $region35: #{tpu_custom_call.1} parent=11 // pred_region
          %s385 = ssub.s32 8192, 8192
          %386 = vsyncadd [#allocation7], %s385
          %s387 = sshll.u32 [#allocation6], 4
          %s388 = int_to_ptr.vmem [resolvable:$true] %s387
          %393 = dma.hbm_to_vmem [thread:$0]  %s7, 8192, %s388, [#allocation7], 256, 256, 16
        $region36: #{tpu_custom_call.1} parent=11 // pred_fallthru
          _
        // Predicated region
        $region37: #{tpu_custom_call.1} parent=11 // pred_check
          %p394 = pneg %p225
        $region38: #{tpu_custom_call.1} parent=11 // pred_check_branch
          %396 = sbr.rel (%p394) target = $region40
        $region39: #{tpu_custom_call.1} parent=11 // pred_region
          _
        $region40: #{tpu_custom_call.1} parent=11 // pred_fallthru
          _
        // Predicated region
        $region41: #{tpu_custom_call.1} parent=11 // pred_check
          %p397 = pneg %p246
        $region42: #{tpu_custom_call.1} parent=11 // pred_check_branch
          %399 = sbr.rel (%p397) target = $region44
        $region43: #{tpu_custom_call.1} parent=11 // pred_region
          _
        $region44: #{tpu_custom_call.1} parent=11 // pred_fallthru
          _
        // Predicated region
        $region45: #{tpu_custom_call.1} parent=11 // pred_check
          %p400 = pneg %p267
        $region46: #{tpu_custom_call.1} parent=11 // pred_check_branch
          %402 = sbr.rel (%p400) target = $region48
        $region47: #{tpu_custom_call.1} parent=11 // pred_region
          _
        $region48: #{tpu_custom_call.1} parent=11 // pred_fallthru
          _
      $region12: #{tpu_custom_call.1} parent=5 // pred_fallthru
        _
      %p403 = scmp.lt.s32.totalorder %s26, 2
      // Predicated region
      $region49: #{tpu_custom_call.1} parent=5 // pred_check
        %p404 = pneg %p403
      $region50: #{tpu_custom_call.1} parent=5 // pred_check_branch
        %406 = sbr.rel (%p404) target = $region52
      $region51: #{tpu_custom_call.1} parent=5 // pred_region
        // Predicated region
        $region53: #{tpu_custom_call.1} parent=51 // pred_check
          %p407 = pneg %p46
        $region54: #{tpu_custom_call.1} parent=51 // pred_check_branch
          %409 = sbr.rel (%p407) target = $region56
        $region55: #{tpu_custom_call.1} parent=51 // pred_region
          %p410 = scmp.lt.s32.totalorder %s26, 1
          %s411 = scalar_select %p410, %s26, 1
          %s412 = smul.addr %s411, 8
          %s413 = scalar_lea.vmem %s0, %s412
        $region56: #{tpu_custom_call.1} parent=51 // pred_fallthru
          _
        // Predicated region
        $region57: #{tpu_custom_call.1} parent=51 // pred_check
          %p414 = pneg %p114
        $region58: #{tpu_custom_call.1} parent=51 // pred_check_branch
          %416 = sbr.rel (%p414) target = $region60
        $region59: #{tpu_custom_call.1} parent=51 // pred_region
          %s417 = sand.u32 %s104, 1
          %s418 = scalar_lea.sflag [#allocation4], %s417
          %s419 = sand.u32 %s104, 1
          %s420 = smul.addr %s419, 128
          %s421 = scalar_lea.vmem [#allocation3], %s420
          %s422 = smul.u32 16, %s26
          %s424 = ssub.s32 2048, 2048
          %425 = vsyncadd %s418, %s424
          %s426 = smul.addr %s422, 2
          %s427 = smul.addr %s426, 64
          %s428 = scalar_lea.hbm %s3, %s427
          %s429 = sshll.u32 %s421, 4
          %s430 = int_to_ptr.vmem [resolvable:$true] %s429
          %435 = dma.hbm_to_vmem [thread:$0]  %s428, 2048, %s430, %s418, 128, 128, 8
        $region60: #{tpu_custom_call.1} parent=51 // pred_fallthru
          _
      $region52: #{tpu_custom_call.1} parent=5 // pred_fallthru
        _
      %p436 = scmp.le.s32.totalorder 1, %s26
      %p437 = scmp.lt.s32.totalorder %s26, 3
      %p438 = pnand %p436, %p437
      %p439 = pneg %p438
      // Predicated region
      $region61: #{tpu_custom_call.1} parent=5 // pred_check
        _
      $region62: #{tpu_custom_call.1} parent=5 // pred_check_branch
        %441 = sbr.rel (%p438) target = $region64
      $region63: #{tpu_custom_call.1} parent=5 // pred_region
        %s442 = ssub.s32 %s26, 1
        %s443 = sand.u32 %s107, 1
        %s444 = scalar_lea.sflag [#allocation4], %s443
        %s445 = sand.u32 %s107, 1
        %s446 = smul.addr %s445, 128
        %s447 = scalar_lea.vmem [#allocation3], %s446
        // Predicated region
        $region65: #{tpu_custom_call.1} parent=63 // pred_check
          %p448 = pneg %p120
        $region66: #{tpu_custom_call.1} parent=63 // pred_check_branch
          %450 = sbr.rel (%p448) target = $region68
        $region67: #{tpu_custom_call.1} parent=63 // pred_region
          %451 = dma.done %s444, 2048
        $region68: #{tpu_custom_call.1} parent=63 // pred_fallthru
          _
        // Predicated region
        $region69: #{tpu_custom_call.1} parent=63 // pred_check
          %p452 = pneg %p204
        $region70: #{tpu_custom_call.1} parent=63 // pred_check_branch
          %454 = sbr.rel (%p452) target = $region72
        $region71: #{tpu_custom_call.1} parent=63 // pred_region
          %455 = dma.done [#allocation7], 8192
        $region72: #{tpu_custom_call.1} parent=63 // pred_fallthru
          _
        %p456 = scmp.lt.s32.totalorder %s31, 1
        %s457 = scalar_select %p456, %s31, 1
        %s458 = smul.addr %s457, 8
        %s459 = scalar_lea.vmem %s0, %s458
        %p460 = pneg %p52
        %p461 = pneg %p49
        %p462 = pneg %p73
        %p463 = pneg %p70
        %p464 = pneg %p94
        %p465 = pneg %p91
        %s466 = sand.u32 %s107, 1
        %s467 = scalar_lea.sflag [#allocation4], %s466
        %s468 = sand.u32 %s107, 1
        %s469 = smul.addr %s468, 128
        %s470 = scalar_lea.vmem [#allocation3], %s469
        %p471 = pneg %p120
        %p472 = pneg %p117
        %p473 = pneg %p141
        %p474 = pneg %p138
        %p475 = pneg %p162
        %p476 = pneg %p159
        %p477 = pneg %p183
        %p478 = pneg %p180
        %p479 = pneg %p204
        %p480 = pneg %p201
        %p481 = pneg %p225
        %p482 = pneg %p222
        %p483 = pneg %p246
        %p484 = pneg %p243
        %p485 = pneg %p267
        %p486 = pneg %p264
        %p487 = pneg %p288
        %p488 = pneg %p285
        %p489 = pneg %p309
        %p490 = pneg %p306
        %p491 = pneg %p330
        %p492 = pneg %p327
        %p493 = pneg %p351
        %p494 = pneg %p348
        %p495 = scmp.lt.s32.totalorder %s31, 1
        %s496 = scalar_select %p495, %s31, 1
        %s497 = smul.addr %s496, 8
        %s498 = scalar_lea.vmem %s0, %s497
        %s499 = smul.u32 16, %s31
        %p501 = scmp.eq.s32.totalorder %s31, 0
        // Predicated region
        $region73: #{tpu_custom_call.1} parent=63 // pred_check
          %p502 = pneg %p501
        $region74: #{tpu_custom_call.1} parent=63 // pred_check_branch
          %504 = sbr.rel (%p502) target = $region76
        $region75: #{tpu_custom_call.1} parent=63 // pred_region
          %505 = vst [vmem:[#allocation2] sm:$0xff] 0.0
          %506 = vst [vmem:[#allocation2 + $0x8] sm:$0xff] 0.0
        $region76: #{tpu_custom_call.1} parent=63 // pred_fallthru
          _
        %v507 = vld [vmem:[%s498] sm:$0xff]
        %v508 = vadd.f32 %v507, 1.0
        %v509 = vlog2.pop %v508
        %v510 = vmul.f32 %v509, 0.6931472
        %v511 = vld [vmem:[#allocation2] sm:$0xff]
        %v512 = vld [vmem:[#allocation2 + $0x8] sm:$0xff]
        %v513 = vpack.c.bf16 %v510, %v510
        %v514 = vld [vmem:[%s447] sm:$0xff]
        %v515 = vld [vmem:[%s447 + $0x8] sm:$0xff]
        %v516 = vld [vmem:[%s447 + $0x10] sm:$0xff]
        %v517 = vld [vmem:[%s447 + $0x18] sm:$0xff]
        %v518 = vld [vmem:[%s447 + $0x20] sm:$0xff]
        %v519 = vld [vmem:[%s447 + $0x28] sm:$0xff]
        %v520 = vld [vmem:[%s447 + $0x30] sm:$0xff]
        %v521 = vld [vmem:[%s447 + $0x38] sm:$0xff]
        %v522 = vld [vmem:[%s447 + $0x40] sm:$0xff]
        %v523 = vld [vmem:[%s447 + $0x48] sm:$0xff]
        %v524 = vld [vmem:[%s447 + $0x50] sm:$0xff]
        %v525 = vld [vmem:[%s447 + $0x58] sm:$0xff]
        %v526 = vld [vmem:[%s447 + $0x60] sm:$0xff]
        %v527 = vld [vmem:[%s447 + $0x68] sm:$0xff]
        %v528 = vld [vmem:[%s447 + $0x70] sm:$0xff]
        %v529 = vld [vmem:[%s447 + $0x78] sm:$0xff]
        %v546 = vunpack.c.l.b16 %v514
        %v547 = vunpack.c.h.b16 %v514
        %v548 = vunpack.c.l.b16 %v515
        %v549 = vunpack.c.h.b16 %v515
        %v550 = vunpack.c.l.b16 %v516
        %v551 = vunpack.c.h.b16 %v516
        %v552 = vunpack.c.l.b16 %v517
        %v553 = vunpack.c.h.b16 %v517
        %v554 = vunpack.c.l.b16 %v518
        %v555 = vunpack.c.h.b16 %v518
        %v556 = vunpack.c.l.b16 %v519
        %v557 = vunpack.c.h.b16 %v519
        %v558 = vunpack.c.l.b16 %v520
        %v559 = vunpack.c.h.b16 %v520
        %v560 = vunpack.c.l.b16 %v521
        %v561 = vunpack.c.h.b16 %v521
        %v562 = vunpack.c.l.b16 %v522
        %v563 = vunpack.c.h.b16 %v522
        %v564 = vunpack.c.l.b16 %v523
        %v565 = vunpack.c.h.b16 %v523
        %v566 = vunpack.c.l.b16 %v524
        %v567 = vunpack.c.h.b16 %v524
        %v568 = vunpack.c.l.b16 %v525
        %v569 = vunpack.c.h.b16 %v525
        %v570 = vunpack.c.l.b16 %v526
        %v571 = vunpack.c.h.b16 %v526
        %v572 = vunpack.c.l.b16 %v527
        %v573 = vunpack.c.h.b16 %v527
        %v574 = vunpack.c.l.b16 %v528
        %v575 = vunpack.c.h.b16 %v528
        %v576 = vunpack.c.l.b16 %v529
        %v577 = vunpack.c.h.b16 %v529
        %v578 = vpack.c.b16 %v548, %v546
        %v579 = vpack.c.b16 %v549, %v547
        %v580 = vpack.c.b16 %v552, %v550
        %v581 = vpack.c.b16 %v553, %v551
        %v582 = vpack.c.b16 %v556, %v554
        %v583 = vpack.c.b16 %v557, %v555
        %v584 = vpack.c.b16 %v560, %v558
        %v585 = vpack.c.b16 %v561, %v559
        %v586 = vpack.c.b16 %v564, %v562
        %v587 = vpack.c.b16 %v565, %v563
        %v588 = vpack.c.b16 %v568, %v566
        %v589 = vpack.c.b16 %v569, %v567
        %v590 = vpack.c.b16 %v572, %v570
        %v591 = vpack.c.b16 %v573, %v571
        %v592 = vpack.c.b16 %v576, %v574
        %v593 = vpack.c.b16 %v577, %v575
        %610 = vmatprep.subr.bf16.mxu0 %v593
        %611 = vmatpush1.bf16.msra.mxu0 %v592
        %612 = vmatprep.subr.bf16.mxu0 %v591
        %613 = vmatpush1.bf16.msra.mxu0 %v590
        %614 = vmatprep.subr.bf16.mxu0 %v589
        %615 = vmatpush1.bf16.msra.mxu0 %v588
        %616 = vmatprep.subr.bf16.mxu0 %v587
        %617 = vmatpush1.bf16.msra.mxu0 %v586
        %618 = vmatprep.subr.bf16.mxu0 %v585
        %619 = vmatpush1.bf16.msra.mxu0 %v584
        %620 = vmatprep.subr.bf16.mxu0 %v583
        %621 = vmatpush1.bf16.msra.mxu0 %v582
        %622 = vmatprep.subr.bf16.mxu0 %v581
        %623 = vmatpush1.bf16.msra.mxu0 %v580
        %624 = vmatprep.subr.bf16.mxu0 %v579
        %625 = vmatpush1.bf16.msra.mxu0 %v578
        %626 = vmatprep.subr.bf16.mxu0 0
        %627 = vmatpush2.bf16.msra.mxu0 0
        %628 = vmatprep.subr.bf16.mxu0 0
        %629 = vmatpush2.bf16.msra.mxu0 0
        %630 = vmatprep.subr.bf16.mxu0 0
        %631 = vmatpush2.bf16.msra.mxu0 0
        %632 = vmatprep.subr.bf16.mxu0 0
        %633 = vmatpush2.bf16.msra.mxu0 0
        %634 = vmatprep.subr.bf16.mxu0 0
        %635 = vmatpush2.bf16.msra.mxu0 0
        %636 = vmatprep.subr.bf16.mxu0 0
        %637 = vmatpush2.bf16.msra.mxu0 0
        %638 = vmatprep.subr.bf16.mxu0 0
        %639 = vmatpush2.bf16.msra.mxu0 0
        %640 = vmatprep.subr.bf16.mxu0 0
        %641 = vmatpush2.bf16.msra.mxu0 0
        %642 = vmatprep.mubr.bf16.mxu0 0
        %643 = vmatmul.mubr.bf16.gmra.mxu0 %v513
        %v644 = vpop.f32.mrf.mxu0
        %v645 = vadd.f32 0.0, %v644
        %v646 = vpop.f32.mrf.mxu0
        %v647 = vadd.f32 0.0, %v646
        %v648 = vpop.f32.mrf.mxu0
        %v649 = vpop.f32.mrf.mxu0
        %650 = vdwg.mxu0
        %v651 = vadd.f32 %v511, %v645
        %v652 = vadd.f32 %v512, %v647
        %653 = vst [vmem:[#allocation2] sm:$0xff] %v651
        %654 = vst [vmem:[#allocation2 + $0x8] sm:$0xff] %v652
        %p655 = scmp.eq.s32.totalorder %s31, 1
        // Predicated region
        $region77: #{tpu_custom_call.1} parent=63 // pred_check
          %p656 = pneg %p655
        $region78: #{tpu_custom_call.1} parent=63 // pred_check_branch
          %658 = sbr.rel (%p656) target = $region80
        $region79: #{tpu_custom_call.1} parent=63 // pred_region
          %v659 = vld [vmem:[#allocation2] sm:$0xff]
          %v660 = vld [vmem:[#allocation2 + $0x8] sm:$0xff]
          %v661 = vld [vmem:[%s4] sm:$0x3]
          %v663 = vlaneseq
          %v664 = vshrl.u32 %v663, 7
          %v665 = vsub.s32 0, %v664
          %v666 = vrot.slane %v661, %v665
          %v667 = vlaneseq
          %v668 = vshrl.u32 %v667, 7
          %v669 = vsub.s32 1, %v668
          %v670 = vrot.slane %v661, %v669
          %v673 = vadd.f32 %v659, %v666
          %v674 = vadd.f32 %v660, %v670
          %v675 = vrot.slane %v673, 4
          %v676 = vadd.f32 %v673, %v675
          %v677 = vrot.slane %v676, 2
          %v678 = vadd.f32 %v676, %v677
          %v679 = vrot.slane %v678, 1
          %v680 = vadd.f32 %v678, %v679
          %v681 = vrot.slane %v674, 4
          %v682 = vadd.f32 %v674, %v681
          %v683 = vrot.slane %v682, 2
          %v684 = vadd.f32 %v682, %v683
          %v685 = vrot.slane %v684, 1
          %v686 = vadd.f32 %v684, %v685
          %v687 = vrcp.pop 8.0
          %v688 = vmul.f32 %v680, %v687
          %v689 = vmul.f32 %v686, %v687
          %v690 = vsub.f32 %v673, %v688
          %v691 = vsub.f32 %v674, %v689
          %v692 = vmul.f32 %v690, %v690
          %v693 = vmul.f32 %v691, %v691
          %v694 = vrot.slane %v692, 4
          %v695 = vadd.f32 %v692, %v694
          %v696 = vrot.slane %v695, 2
          %v697 = vadd.f32 %v695, %v696
          %v698 = vrot.slane %v697, 1
          %v699 = vadd.f32 %v697, %v698
          %v700 = vrot.slane %v693, 4
          %v701 = vadd.f32 %v693, %v700
          %v702 = vrot.slane %v701, 2
          %v703 = vadd.f32 %v701, %v702
          %v704 = vrot.slane %v703, 1
          %v705 = vadd.f32 %v703, %v704
          %v706 = vmul.f32 %v699, %v687
          %v707 = vmul.f32 %v705, %v687
          %v708 = vadd.f32 %v706, 0.001
          %v709 = vadd.f32 %v707, 0.001
          %v710 = vrsqrt.pop %v708
          %v711 = vrsqrt.pop %v709
          %v712 = vmul.f32 %v690, %v710
          %v713 = vmul.f32 %v691, %v711
          %v714 = vld [vmem:[%s5] sm:$0x3]
          %v716 = vlaneseq
          %v717 = vshrl.u32 %v716, 7
          %v718 = vsub.s32 0, %v717
          %v719 = vrot.slane %v714, %v718
          %v720 = vlaneseq
          %v721 = vshrl.u32 %v720, 7
          %v722 = vsub.s32 1, %v721
          %v723 = vrot.slane %v714, %v722
          %v726 = vmul.f32 %v712, %v719
          %v727 = vmul.f32 %v713, %v723
          %v728 = vld [vmem:[%s6] sm:$0x3]
          %v730 = vlaneseq
          %v731 = vshrl.u32 %v730, 7
          %v732 = vsub.s32 0, %v731
          %v733 = vrot.slane %v728, %v732
          %v734 = vlaneseq
          %v735 = vshrl.u32 %v734, 7
          %v736 = vsub.s32 1, %v735
          %v737 = vrot.slane %v728, %v736
          %v740 = vadd.f32 %v726, %v733
          %v741 = vadd.f32 %v727, %v737
          %v742 = vmax.f32 %v740, 0.0
          %v743 = vmax.f32 %v741, 0.0
          %v744 = vpack.c.bf16 %v742, %v742
          %v745 = vpack.c.bf16 %v743, %v743
          %v746 = vld [vmem:[#allocation6] sm:$0xff]
          %v747 = vld [vmem:[#allocation6 + $0x8] sm:$0xff]
          %v748 = vld [vmem:[#allocation6 + $0x10] sm:$0xff]
          %v749 = vld [vmem:[#allocation6 + $0x18] sm:$0xff]
          %v750 = vld [vmem:[#allocation6 + $0x20] sm:$0xff]
          %v751 = vld [vmem:[#allocation6 + $0x28] sm:$0xff]
          %v752 = vld [vmem:[#allocation6 + $0x30] sm:$0xff]
          %v753 = vld [vmem:[#allocation6 + $0x38] sm:$0xff]
          %v754 = vld [vmem:[#allocation6 + $0x40] sm:$0xff]
          %v755 = vld [vmem:[#allocation6 + $0x48] sm:$0xff]
          %v756 = vld [vmem:[#allocation6 + $0x50] sm:$0xff]
          %v757 = vld [vmem:[#allocation6 + $0x58] sm:$0xff]
          %v758 = vld [vmem:[#allocation6 + $0x60] sm:$0xff]
          %v759 = vld [vmem:[#allocation6 + $0x68] sm:$0xff]
          %v760 = vld [vmem:[#allocation6 + $0x70] sm:$0xff]
          %v761 = vld [vmem:[#allocation6 + $0x78] sm:$0xff]
          %v762 = vld [vmem:[#allocation6 + $0x80] sm:$0xff]
          %v763 = vld [vmem:[#allocation6 + $0x88] sm:$0xff]
          %v764 = vld [vmem:[#allocation6 + $0x90] sm:$0xff]
          %v765 = vld [vmem:[#allocation6 + $0x98] sm:$0xff]
          %v766 = vld [vmem:[#allocation6 + $0xa0] sm:$0xff]
          %v767 = vld [vmem:[#allocation6 + $0xa8] sm:$0xff]
          %v768 = vld [vmem:[#allocation6 + $0xb0] sm:$0xff]
          %v769 = vld [vmem:[#allocation6 + $0xb8] sm:$0xff]
          %v770 = vld [vmem:[#allocation6 + $0xc0] sm:$0xff]
          %v771 = vld [vmem:[#allocation6 + $0xc8] sm:$0xff]
          %v772 = vld [vmem:[#allocation6 + $0xd0] sm:$0xff]
          %v773 = vld [vmem:[#allocation6 + $0xd8] sm:$0xff]
          %v774 = vld [vmem:[#allocation6 + $0xe0] sm:$0xff]
          %v775 = vld [vmem:[#allocation6 + $0xe8] sm:$0xff]
          %v776 = vld [vmem:[#allocation6 + $0xf0] sm:$0xff]
          %v777 = vld [vmem:[#allocation6 + $0xf8] sm:$0xff]
          %v778 = vld [vmem:[#allocation6 + $0x100] sm:$0xff]
          %v779 = vld [vmem:[#allocation6 + $0x108] sm:$0xff]
          %v780 = vld [vmem:[#allocation6 + $0x110] sm:$0xff]
          %v781 = vld [vmem:[#allocation6 + $0x118] sm:$0xff]
          %v782 = vld [vmem:[#allocation6 + $0x120] sm:$0xff]
          %v783 = vld [vmem:[#allocation6 + $0x128] sm:$0xff]
          %v784 = vld [vmem:[#allocation6 + $0x130] sm:$0xff]
          %v785 = vld [vmem:[#allocation6 + $0x138] sm:$0xff]
          %v786 = vld [vmem:[#allocation6 + $0x140] sm:$0xff]
          %v787 = vld [vmem:[#allocation6 + $0x148] sm:$0xff]
          %v788 = vld [vmem:[#allocation6 + $0x150] sm:$0xff]
          %v789 = vld [vmem:[#allocation6 + $0x158] sm:$0xff]
          %v790 = vld [vmem:[#allocation6 + $0x160] sm:$0xff]
          %v791 = vld [vmem:[#allocation6 + $0x168] sm:$0xff]
          %v792 = vld [vmem:[#allocation6 + $0x170] sm:$0xff]
          %v793 = vld [vmem:[#allocation6 + $0x178] sm:$0xff]
          %v794 = vld [vmem:[#allocation6 + $0x180] sm:$0xff]
          %v795 = vld [vmem:[#allocation6 + $0x188] sm:$0xff]
          %v796 = vld [vmem:[#allocation6 + $0x190] sm:$0xff]
          %v797 = vld [vmem:[#allocation6 + $0x198] sm:$0xff]
          %v798 = vld [vmem:[#allocation6 + $0x1a0] sm:$0xff]
          %v799 = vld [vmem:[#allocation6 + $0x1a8] sm:$0xff]
          %v800 = vld [vmem:[#allocation6 + $0x1b0] sm:$0xff]
          %v801 = vld [vmem:[#allocation6 + $0x1b8] sm:$0xff]
          %v802 = vld [vmem:[#allocation6 + $0x1c0] sm:$0xff]
          %v803 = vld [vmem:[#allocation6 + $0x1c8] sm:$0xff]
          %v804 = vld [vmem:[#allocation6 + $0x1d0] sm:$0xff]
          %v805 = vld [vmem:[#allocation6 + $0x1d8] sm:$0xff]
          %v806 = vld [vmem:[#allocation6 + $0x1e0] sm:$0xff]
          %v807 = vld [vmem:[#allocation6 + $0x1e8] sm:$0xff]
          %v808 = vld [vmem:[#allocation6 + $0x1f0] sm:$0xff]
          %v809 = vld [vmem:[#allocation6 + $0x1f8] sm:$0xff]
          %v810 = vld [vmem:[%s8] sm:$0xf]
          %v812 = vlaneseq
          %v813 = vshrl.u32 %v812, 7
          %v814 = vsub.s32 0, %v813
          %v815 = vrot.slane %v810, %v814
          %v816 = vlaneseq
          %v817 = vshrl.u32 %v816, 7
          %v818 = vsub.s32 1, %v817
          %v819 = vrot.slane %v810, %v818
          %v820 = vlaneseq
          %v821 = vshrl.u32 %v820, 7
          %v822 = vsub.s32 2, %v821
          %v823 = vrot.slane %v810, %v822
          %v824 = vlaneseq
          %v825 = vshrl.u32 %v824, 7
          %v826 = vsub.s32 3, %v825
          %v827 = vrot.slane %v810, %v826
          %v896 = vunpack.c.l.b16 %v746
          %v897 = vunpack.c.h.b16 %v746
          %v898 = vunpack.c.l.b16 %v747
          %v899 = vunpack.c.h.b16 %v747
          %v900 = vunpack.c.l.b16 %v748
          %v901 = vunpack.c.h.b16 %v748
          %v902 = vunpack.c.l.b16 %v749
          %v903 = vunpack.c.h.b16 %v749
          %v904 = vunpack.c.l.b16 %v750
          %v905 = vunpack.c.h.b16 %v750
          %v906 = vunpack.c.l.b16 %v751
          %v907 = vunpack.c.h.b16 %v751
          %v908 = vunpack.c.l.b16 %v752
          %v909 = vunpack.c.h.b16 %v752
          %v910 = vunpack.c.l.b16 %v753
          %v911 = vunpack.c.h.b16 %v753
          %v912 = vunpack.c.l.b16 %v754
          %v913 = vunpack.c.h.b16 %v754
          %v914 = vunpack.c.l.b16 %v755
          %v915 = vunpack.c.h.b16 %v755
          %v916 = vunpack.c.l.b16 %v756
          %v917 = vunpack.c.h.b16 %v756
          %v918 = vunpack.c.l.b16 %v757
          %v919 = vunpack.c.h.b16 %v757
          %v920 = vunpack.c.l.b16 %v758
          %v921 = vunpack.c.h.b16 %v758
          %v922 = vunpack.c.l.b16 %v759
          %v923 = vunpack.c.h.b16 %v759
          %v924 = vunpack.c.l.b16 %v760
          %v925 = vunpack.c.h.b16 %v760
          %v926 = vunpack.c.l.b16 %v761
          %v927 = vunpack.c.h.b16 %v761
          %v928 = vunpack.c.l.b16 %v762
          %v929 = vunpack.c.h.b16 %v762
          %v930 = vunpack.c.l.b16 %v763
          %v931 = vunpack.c.h.b16 %v763
          %v932 = vunpack.c.l.b16 %v764
          %v933 = vunpack.c.h.b16 %v764
          %v934 = vunpack.c.l.b16 %v765
          %v935 = vunpack.c.h.b16 %v765
          %v936 = vunpack.c.l.b16 %v766
          %v937 = vunpack.c.h.b16 %v766
          %v938 = vunpack.c.l.b16 %v767
          %v939 = vunpack.c.h.b16 %v767
          %v940 = vunpack.c.l.b16 %v768
          %v941 = vunpack.c.h.b16 %v768
          %v942 = vunpack.c.l.b16 %v769
          %v943 = vunpack.c.h.b16 %v769
          %v944 = vunpack.c.l.b16 %v770
          %v945 = vunpack.c.h.b16 %v770
          %v946 = vunpack.c.l.b16 %v771
          %v947 = vunpack.c.h.b16 %v771
          %v948 = vunpack.c.l.b16 %v772
          %v949 = vunpack.c.h.b16 %v772
          %v950 = vunpack.c.l.b16 %v773
          %v951 = vunpack.c.h.b16 %v773
          %v952 = vunpack.c.l.b16 %v774
          %v953 = vunpack.c.h.b16 %v774
          %v954 = vunpack.c.l.b16 %v775
          %v955 = vunpack.c.h.b16 %v775
          %v956 = vunpack.c.l.b16 %v776
          %v957 = vunpack.c.h.b16 %v776
          %v958 = vunpack.c.l.b16 %v777
          %v959 = vunpack.c.h.b16 %v777
          %v960 = vunpack.c.l.b16 %v778
          %v961 = vunpack.c.h.b16 %v778
          %v962 = vunpack.c.l.b16 %v779
          %v963 = vunpack.c.h.b16 %v779
          %v964 = vunpack.c.l.b16 %v780
          %v965 = vunpack.c.h.b16 %v780
          %v966 = vunpack.c.l.b16 %v781
          %v967 = vunpack.c.h.b16 %v781
          %v968 = vunpack.c.l.b16 %v782
          %v969 = vunpack.c.h.b16 %v782
          %v970 = vunpack.c.l.b16 %v783
          %v971 = vunpack.c.h.b16 %v783
          %v972 = vunpack.c.l.b16 %v784
          %v973 = vunpack.c.h.b16 %v784
          %v974 = vunpack.c.l.b16 %v785
          %v975 = vunpack.c.h.b16 %v785
          %v976 = vunpack.c.l.b16 %v786
          %v977 = vunpack.c.h.b16 %v786
          %v978 = vunpack.c.l.b16 %v787
          %v979 = vunpack.c.h.b16 %v787
          %v980 = vunpack.c.l.b16 %v788
          %v981 = vunpack.c.h.b16 %v788
          %v982 = vunpack.c.l.b16 %v789
          %v983 = vunpack.c.h.b16 %v789
          %v984 = vunpack.c.l.b16 %v790
          %v985 = vunpack.c.h.b16 %v790
          %v986 = vunpack.c.l.b16 %v791
          %v987 = vunpack.c.h.b16 %v791
          %v988 = vunpack.c.l.b16 %v792
          %v989 = vunpack.c.h.b16 %v792
          %v990 = vunpack.c.l.b16 %v793
          %v991 = vunpack.c.h.b16 %v793
          %v992 = vunpack.c.l.b16 %v794
          %v993 = vunpack.c.h.b16 %v794
          %v994 = vunpack.c.l.b16 %v795
          %v995 = vunpack.c.h.b16 %v795
          %v996 = vunpack.c.l.b16 %v796
          %v997 = vunpack.c.h.b16 %v796
          %v998 = vunpack.c.l.b16 %v797
          %v999 = vunpack.c.h.b16 %v797
          %v1000 = vunpack.c.l.b16 %v798
          %v1001 = vunpack.c.h.b16 %v798
          %v1002 = vunpack.c.l.b16 %v799
          %v1003 = vunpack.c.h.b16 %v799
          %v1004 = vunpack.c.l.b16 %v800
          %v1005 = vunpack.c.h.b16 %v800
          %v1006 = vunpack.c.l.b16 %v801
          %v1007 = vunpack.c.h.b16 %v801
          %v1008 = vunpack.c.l.b16 %v802
          %v1009 = vunpack.c.h.b16 %v802
          %v1010 = vunpack.c.l.b16 %v803
          %v1011 = vunpack.c.h.b16 %v803
          %v1012 = vunpack.c.l.b16 %v804
          %v1013 = vunpack.c.h.b16 %v804
          %v1014 = vunpack.c.l.b16 %v805
          %v1015 = vunpack.c.h.b16 %v805
          %v1016 = vunpack.c.l.b16 %v806
          %v1017 = vunpack.c.h.b16 %v806
          %v1018 = vunpack.c.l.b16 %v807
          %v1019 = vunpack.c.h.b16 %v807
          %v1020 = vunpack.c.l.b16 %v808
          %v1021 = vunpack.c.h.b16 %v808
          %v1022 = vunpack.c.l.b16 %v809
          %v1023 = vunpack.c.h.b16 %v809
          %v1024 = vpack.c.b16 %v900, %v896
          %v1025 = vpack.c.b16 %v901, %v897
          %v1026 = vpack.c.b16 %v902, %v898
          %v1027 = vpack.c.b16 %v903, %v899
          %v1028 = vpack.c.b16 %v908, %v904
          %v1029 = vpack.c.b16 %v909, %v905
          %v1030 = vpack.c.b16 %v910, %v906
          %v1031 = vpack.c.b16 %v911, %v907
          %v1032 = vpack.c.b16 %v916, %v912
          %v1033 = vpack.c.b16 %v917, %v913
          %v1034 = vpack.c.b16 %v918, %v914
          %v1035 = vpack.c.b16 %v919, %v915
          %v1036 = vpack.c.b16 %v924, %v920
          %v1037 = vpack.c.b16 %v925, %v921
          %v1038 = vpack.c.b16 %v926, %v922
          %v1039 = vpack.c.b16 %v927, %v923
          %v1040 = vpack.c.b16 %v932, %v928
          %v1041 = vpack.c.b16 %v933, %v929
          %v1042 = vpack.c.b16 %v934, %v930
          %v1043 = vpack.c.b16 %v935, %v931
          %v1044 = vpack.c.b16 %v940, %v936
          %v1045 = vpack.c.b16 %v941, %v937
          %v1046 = vpack.c.b16 %v942, %v938
          %v1047 = vpack.c.b16 %v943, %v939
          %v1048 = vpack.c.b16 %v948, %v944
          %v1049 = vpack.c.b16 %v949, %v945
          %v1050 = vpack.c.b16 %v950, %v946
          %v1051 = vpack.c.b16 %v951, %v947
          %v1052 = vpack.c.b16 %v956, %v952
          %v1053 = vpack.c.b16 %v957, %v953
          %v1054 = vpack.c.b16 %v958, %v954
          %v1055 = vpack.c.b16 %v959, %v955
          %v1056 = vpack.c.b16 %v964, %v960
          %v1057 = vpack.c.b16 %v965, %v961
          %v1058 = vpack.c.b16 %v966, %v962
          %v1059 = vpack.c.b16 %v967, %v963
          %v1060 = vpack.c.b16 %v972, %v968
          %v1061 = vpack.c.b16 %v973, %v969
          %v1062 = vpack.c.b16 %v974, %v970
          %v1063 = vpack.c.b16 %v975, %v971
          %v1064 = vpack.c.b16 %v980, %v976
          %v1065 = vpack.c.b16 %v981, %v977
          %v1066 = vpack.c.b16 %v982, %v978
          %v1067 = vpack.c.b16 %v983, %v979
          %v1068 = vpack.c.b16 %v988, %v984
          %v1069 = vpack.c.b16 %v989, %v985
          %v1070 = vpack.c.b16 %v990, %v986
          %v1071 = vpack.c.b16 %v991, %v987
          %v1072 = vpack.c.b16 %v996, %v992
          %v1073 = vpack.c.b16 %v997, %v993
          %v1074 = vpack.c.b16 %v998, %v994
          %v1075 = vpack.c.b16 %v999, %v995
          %v1076 = vpack.c.b16 %v1004, %v1000
          %v1077 = vpack.c.b16 %v1005, %v1001
          %v1078 = vpack.c.b16 %v1006, %v1002
          %v1079 = vpack.c.b16 %v1007, %v1003
          %v1080 = vpack.c.b16 %v1012, %v1008
          %v1081 = vpack.c.b16 %v1013, %v1009
          %v1082 = vpack.c.b16 %v1014, %v1010
          %v1083 = vpack.c.b16 %v1015, %v1011
          %v1084 = vpack.c.b16 %v1020, %v1016
          %v1085 = vpack.c.b16 %v1021, %v1017
          %v1086 = vpack.c.b16 %v1022, %v1018
          %v1087 = vpack.c.b16 %v1023, %v1019
          %1152 = vmatprep.subr.bf16.mxu0 %v1053
          %1153 = vmatpush1.bf16.msra.mxu0 %v1052
          %1154 = vmatprep.subr.bf16.mxu0 %v1049
          %1155 = vmatpush1.bf16.msra.mxu0 %v1048
          %1156 = vmatprep.subr.bf16.mxu0 %v1045
          %1157 = vmatpush1.bf16.msra.mxu0 %v1044
          %1158 = vmatprep.subr.bf16.mxu0 %v1041
          %1159 = vmatpush1.bf16.msra.mxu0 %v1040
          %1160 = vmatprep.subr.bf16.mxu0 %v1037
          %1161 = vmatpush1.bf16.msra.mxu0 %v1036
          %1162 = vmatprep.subr.bf16.mxu0 %v1033
          %1163 = vmatpush1.bf16.msra.mxu0 %v1032
          %1164 = vmatprep.subr.bf16.mxu0 %v1029
          %1165 = vmatpush1.bf16.msra.mxu0 %v1028
          %1166 = vmatprep.subr.bf16.mxu0 %v1025
          %1167 = vmatpush1.bf16.msra.mxu0 %v1024
          %1168 = vmatprep.subr.bf16.mxu0 %v1085
          %1169 = vmatpush2.bf16.msra.mxu0 %v1084
          %1170 = vmatprep.subr.bf16.mxu0 %v1081
          %1171 = vmatpush2.bf16.msra.mxu0 %v1080
          %1172 = vmatprep.subr.bf16.mxu0 %v1077
          %1173 = vmatpush2.bf16.msra.mxu0 %v1076
          %1174 = vmatprep.subr.bf16.mxu0 %v1073
          %1175 = vmatpush2.bf16.msra.mxu0 %v1072
          %1176 = vmatprep.subr.bf16.mxu0 %v1069
          %1177 = vmatpush2.bf16.msra.mxu0 %v1068
          %1178 = vmatprep.subr.bf16.mxu0 %v1065
          %1179 = vmatpush2.bf16.msra.mxu0 %v1064
          %1180 = vmatprep.subr.bf16.mxu0 %v1061
          %1181 = vmatpush2.bf16.msra.mxu0 %v1060
          %1182 = vmatprep.subr.bf16.mxu0 %v1057
          %1183 = vmatpush2.bf16.msra.mxu0 %v1056
          %1184 = vmatprep.mubr.bf16.mxu0 %v745
          %1185 = vmatmul.mubr.bf16.gmra.mxu0 %v744
          %v1186 = vpop.f32.mrf.mxu0
          %v1187 = vadd.f32 %v815, %v1186
          %v1188 = vpop.f32.mrf.mxu0
          %v1189 = vadd.f32 %v819, %v1188
          %v1190 = vpop.f32.mrf.mxu0
          %v1191 = vpop.f32.mrf.mxu0
          %1192 = vdwg.mxu0
          %1193 = vmatprep.subr.bf16.mxu0 %v1055
          %1194 = vmatpush1.bf16.msra.mxu0 %v1054
          %1195 = vmatprep.subr.bf16.mxu0 %v1051
          %1196 = vmatpush1.bf16.msra.mxu0 %v1050
          %1197 = vmatprep.subr.bf16.mxu0 %v1047
          %1198 = vmatpush1.bf16.msra.mxu0 %v1046
          %1199 = vmatprep.subr.bf16.mxu0 %v1043
          %1200 = vmatpush1.bf16.msra.mxu0 %v1042
          %1201 = vmatprep.subr.bf16.mxu0 %v1039
          %1202 = vmatpush1.bf16.msra.mxu0 %v1038
          %1203 = vmatprep.subr.bf16.mxu0 %v1035
          %1204 = vmatpush1.bf16.msra.mxu0 %v1034
          %1205 = vmatprep.subr.bf16.mxu0 %v1031
          %1206 = vmatpush1.bf16.msra.mxu0 %v1030
          %1207 = vmatprep.subr.bf16.mxu0 %v1027
          %1208 = vmatpush1.bf16.msra.mxu0 %v1026
          %1209 = vmatprep.subr.bf16.mxu0 %v1087
          %1210 = vmatpush2.bf16.msra.mxu0 %v1086
          %1211 = vmatprep.subr.bf16.mxu0 %v1083
          %1212 = vmatpush2.bf16.msra.mxu0 %v1082
          %1213 = vmatprep.subr.bf16.mxu0 %v1079
          %1214 = vmatpush2.bf16.msra.mxu0 %v1078
          %1215 = vmatprep.subr.bf16.mxu0 %v1075
          %1216 = vmatpush2.bf16.msra.mxu0 %v1074
          %1217 = vmatprep.subr.bf16.mxu0 %v1071
          %1218 = vmatpush2.bf16.msra.mxu0 %v1070
          %1219 = vmatprep.subr.bf16.mxu0 %v1067
          %1220 = vmatpush2.bf16.msra.mxu0 %v1066
          %1221 = vmatprep.subr.bf16.mxu0 %v1063
          %1222 = vmatpush2.bf16.msra.mxu0 %v1062
          %1223 = vmatprep.subr.bf16.mxu0 %v1059
          %1224 = vmatpush2.bf16.msra.mxu0 %v1058
          %1225 = vmatprep.mubr.bf16.mxu0 %v745
          %1226 = vmatmul.mubr.bf16.gmra.mxu0 %v744
          %v1227 = vpop.f32.mrf.mxu0
          %v1228 = vadd.f32 %v823, %v1227
          %v1229 = vpop.f32.mrf.mxu0
          %v1230 = vadd.f32 %v827, %v1229
          %v1231 = vpop.f32.mrf.mxu0
          %v1232 = vpop.f32.mrf.mxu0
          %1233 = vdwg.mxu0
          %v1234 = vmul.f32 %v1189, 1.442695
          %v1235 = vpow.pop %v1234
          %v1236 = vmul.f32 %v1189, 0.5
          %v1237 = vmul.f32 %v1236, 1.442695
          %v1238 = vpow.pop %v1237
          %v1239 = vld [vmem:[%s1] sm:$0xff]
          %v1240 = vmul.f32 %v1238, %v1239
          %v1241 = vadd.f32 %v1187, %v1240
          %vm1242 = vcmask 80896
          %1243 = vst.msk [vmem:[#allocation8] sm:$0xff] %vm1242, %v1241
          %v1244 = vmul.f32 %v1230, 1.442695
          %v1245 = vpow.pop %v1244
          %v1246 = vmul.f32 %v1230, 0.5
          %v1247 = vmul.f32 %v1246, 1.442695
          %v1248 = vpow.pop %v1247
          %v1249 = vld [vmem:[%s2] sm:$0xff]
          %v1250 = vmul.f32 %v1248, %v1249
          %v1251 = vadd.f32 %v1228, %v1250
          %vm1252 = vcmask 7168
          %1253 = vst.msk [vmem:[%s12] sm:$0xff] %vm1252, %v1251
          %v1254 = vmul.f32 %v1187, %v1187
          %v1255 = vadd.f32 %v1235, %v1254
          %v1256 = vsub.f32 %v1255, 1.0
          %v1257 = vsub.f32 %v1256, %v1189
          %v1258 = vmul.f32 %v1257, 0.5
          %v1259 = vsel %vm1242, %v1258, 0.0
          %1260 = vadd.xlane.f32.xlu0 %v1259
          %v1261 = vpop.xlane.xlu0 %1260
          %1262 = vst.msk [vmem:[%s13] sm:$0xff] %vm1252, %v1261
          %v1263 = vld [vmem:[%s9] sm:$0xff]
          %v1264 = vld [vmem:[%s10] sm:$0xff]
          %v1265 = vrcp.pop %v1264
          %v1266 = vmul.f32 %v1245, %v1265
          %v1267 = vsub.f32 %v1228, %v1263
          %v1268 = vmul.f32 %v1267, %v1267
          %v1269 = vmul.f32 %v1268, %v1265
          %v1270 = vadd.f32 %v1266, %v1269
          %v1271 = vsub.f32 %v1270, 1.0
          %v1272 = vlog2.pop %v1266
          %v1273 = vmul.f32 %v1272, 0.6931472
          %v1274 = vsub.f32 %v1271, %v1273
          %v1275 = vmul.f32 %v1274, 0.5
          %1276 = vst.msk [vmem:[%s14] sm:$0xff] %vm1252, %v1275
        $region80: #{tpu_custom_call.1} parent=63 // pred_fallthru
          _
        // Predicated region
        $region81: #{tpu_custom_call.1} parent=63 // pred_check
          %p1277 = pneg %p285
        $region82: #{tpu_custom_call.1} parent=63 // pred_check_branch
          %1279 = sbr.rel (%p1277) target = $region84
        $region83: #{tpu_custom_call.1} parent=63 // pred_region
          %s1281 = ssub.s32 128, 128
          %1282 = vsyncadd [#allocation5], %s1281
          %s1284 = sshll.u32 [#allocation8], 4
          %s1285 = int_to_ptr.vmem [resolvable:$true] %s1284
          %1287 = dma.vmem_to_hbm [thread:$0]  %s1285, 128, %s11, [#allocation5]
        $region84: #{tpu_custom_call.1} parent=63 // pred_fallthru
          _
        // Predicated region
        $region85: #{tpu_custom_call.1} parent=63 // pred_check
          %p1288 = pneg %p306
        $region86: #{tpu_custom_call.1} parent=63 // pred_check_branch
          %1290 = sbr.rel (%p1288) target = $region88
        $region87: #{tpu_custom_call.1} parent=63 // pred_region
          _
        $region88: #{tpu_custom_call.1} parent=63 // pred_fallthru
          _
        // Predicated region
        $region89: #{tpu_custom_call.1} parent=63 // pred_check
          %p1291 = pneg %p327
        $region90: #{tpu_custom_call.1} parent=63 // pred_check_branch
          %1293 = sbr.rel (%p1291) target = $region92
        $region91: #{tpu_custom_call.1} parent=63 // pred_region
          _
        $region92: #{tpu_custom_call.1} parent=63 // pred_fallthru
          _
        // Predicated region
        $region93: #{tpu_custom_call.1} parent=63 // pred_check
          %p1294 = pneg %p348
        $region94: #{tpu_custom_call.1} parent=63 // pred_check_branch
          %1296 = sbr.rel (%p1294) target = $region96
        $region95: #{tpu_custom_call.1} parent=63 // pred_region
          _
        $region96: #{tpu_custom_call.1} parent=63 // pred_fallthru
          _
        // Predicated region
        $region97: #{tpu_custom_call.1} parent=63 // pred_check
          %p1297 = pneg %p285
        $region98: #{tpu_custom_call.1} parent=63 // pred_check_branch
          %1299 = sbr.rel (%p1297) target = $region100
        $region99: #{tpu_custom_call.1} parent=63 // pred_region
          %1300 = dma.done [#allocation5], 128
        $region100: #{tpu_custom_call.1} parent=63 // pred_fallthru
          _
        // Predicated region
        $region101: #{tpu_custom_call.1} parent=63 // pred_check
          %p1301 = pneg %p306
        $region102: #{tpu_custom_call.1} parent=63 // pred_check_branch
          %1303 = sbr.rel (%p1301) target = $region104
        $region103: #{tpu_custom_call.1} parent=63 // pred_region
          _
        $region104: #{tpu_custom_call.1} parent=63 // pred_fallthru
          _
        // Predicated region
        $region105: #{tpu_custom_call.1} parent=63 // pred_check
          %p1304 = pneg %p327
        $region106: #{tpu_custom_call.1} parent=63 // pred_check_branch
          %1306 = sbr.rel (%p1304) target = $region108
        $region107: #{tpu_custom_call.1} parent=63 // pred_region
          _
        $region108: #{tpu_custom_call.1} parent=63 // pred_fallthru
          _
        // Predicated region
        $region109: #{tpu_custom_call.1} parent=63 // pred_check
          %p1307 = pneg %p348
        $region110: #{tpu_custom_call.1} parent=63 // pred_check_branch
          %1309 = sbr.rel (%p1307) target = $region112
        $region111: #{tpu_custom_call.1} parent=63 // pred_region
          _
        $region112: #{tpu_custom_call.1} parent=63 // pred_fallthru
          _
      $region64: #{tpu_custom_call.1} parent=5 // pred_fallthru
        _
      %p1310 = scmp.le.s32.totalorder 2, %s26
      // Predicated region
      $region113: #{tpu_custom_call.1} parent=5 // pred_check
        %p1311 = pneg %p1310
      $region114: #{tpu_custom_call.1} parent=5 // pred_check_branch
        %1313 = sbr.rel (%p1311) target = $region116
      $region115: #{tpu_custom_call.1} parent=5 // pred_region
        %s1314 = ssub.s32 %s26, 2
      $region116: #{tpu_custom_call.1} parent=5 // pred_fallthru
        _
    $region6: #{tpu_custom_call.1} parent=1 // loop_footer
      %s30 = sadd.s32 1, %s26
    $region7: #{tpu_custom_call.1} parent=1 // loop_footer_branch
      %25 = sbr.rel target = $region3
    $region8: #{tpu_custom_call.1} parent=1 // loop_exit
      _
    %1315 = vsyncpa [#allocation4], 1
    %s1316 = scalar_lea.sflag [#allocation4], 1
    %1317 = vsyncpa %s1316, 1
    %1318 = vsyncpa [#allocation7], 1
    %1319 = vsyncpa [#allocation5], 1
    %s1320 = scalar_lea.sflag [#allocation5], 1
    %1321 = vsyncpa %s1320, 1

</llo_original>
